<compile_context>
chip_gen: v5e
topology: v5e:2x2
jax: 0.10.0
libtpu: 0.0.40
codegen_flags: <defaults>
</compile_context>

<pallas_src>
import jax
import jax.numpy as jnp
from jax.experimental import pallas as pl
from jax.experimental.pallas import tpu as pltpu

SIGMA = 0.5                      # out_proj_args
ALPHA = 1.0 / (SIGMA * SIGMA)
EPS = 1e-6
NUM_LAYERS = 2
LANE = 128                       # lane width: feature axes padded to this
SUBLANE = 8                      # f32 sublane requirement: node axis padded to this


def _round_up(v, m):
    return ((v + m - 1) // m) * m


def _kernel_map(h, w_t, lintrans):
    """KernelLayer forward on a (rows, d_in) tile.

    `w_t` is (d_in, d_out) already scaled by alpha; `lintrans` already has exp(-alpha)
    folded in, so the map is  ||h|| * exp(unit(h) @ w_t) @ lintrans  with no transpose,
    no scalar subtract and a single EUP rsqrt instead of sqrt+divide.

    NOTE: eps handling differs slightly from the reference (rsqrt(sumsq + EPS^2) and
    norm = sumsq * inv_norm vs. h / max(||h||, EPS)); identical to ~1e-12 for O(1)-norm
    rows, diverges only for near-zero-norm rows.
    """
    sumsq = jnp.sum(h * h, axis=-1, keepdims=True)
    inv_norm = jax.lax.rsqrt(sumsq + EPS * EPS)      # EUP rsqrt; no divide / compare
    hu = h * inv_norm
    norm = sumsq * inv_norm                          # == ||h|| (up to eps)
    k = jnp.exp(jnp.dot(hu, w_t, preferred_element_type=jnp.float32))
    return norm * jnp.dot(k, lintrans, preferred_element_type=jnp.float32)


def supfie_kernel(x_ref, a_ref,
                  w0_ref, l0_ref,
                  mu1_ref, w1_ref, l1_ref,
                  mu2_ref, w2_ref, l2_ref,
                  o_ref):
    x = x_ref[...]          # (ROWS, D_PAD)  several graphs' node features stacked row-wise
    a = a_ref[...]          # (ROWS, ROWS)   block-diagonal row-normalised adjacency

    # in_head: KernelLayer(input_size -> hidden_size)
    h = _kernel_map(x, w0_ref[...], l0_ref[...])

    # NUM_LAYERS x FIELayer (unrolled; all matmuls hit the MXU, feature dims are 128-mult)
    for mu_ref, w_ref, l_ref in ((mu1_ref, w1_ref, l1_ref),
                                 (mu2_ref, w2_ref, l2_ref)):
        agg = jnp.dot(a, h, preferred_element_type=jnp.float32)   # neighbour mean agg
        z = agg - mu_ref[...]                                      # FIE grad wrt mixture mean
        h = _kernel_map(z, w_ref[...], l_ref[...]) + h             # kernel out_proj + residue

    o_ref[...] = h


def supfie_forward(x, a, params, num_groups=2):
    """x: (B, N, D) node features; a: (B, N, N) row-normalised adjacency with self loops.

    Graphs are packed `B // num_groups` per grid step (node rows stacked, block-diagonal
    adjacency). num_groups=2 keeps both v7x TensorCores busy via the parallel grid axis.
    """
    B, N, D = x.shape
    H = params["w0"].shape[0]
    d_pad = _round_up(D, LANE)          # lane-dense feature axes
    h_pad = _round_up(H, LANE)
    n_pad = _round_up(N, SUBLANE)       # node axis only needs f32 sublane alignment

    ng = num_groups if (num_groups > 0 and B % num_groups == 0) else 1
    g_per = B // ng                     # graphs packed per grid step
    rows = g_per * n_pad                # node rows per grid step

    # ---- host-side constant folding + zero padding (parameters are constants -> free) ----
    def fold(w, l, d_in_pad):
        w_t = jnp.pad((ALPHA * w).T,
                      ((0, d_in_pad - w.shape[1]), (0, h_pad - w.shape[0])))
        l_f = jnp.pad(jnp.exp(-ALPHA) * l,
                      ((0, h_pad - l.shape[0]), (0, h_pad - l.shape[1])))
        return w_t, l_f

    w0_t, l0_f = fold(params["w0"], params["l0"], d_pad)
    w1_t, l1_f = fold(params["w1"], params["l1"], h_pad)
    w2_t, l2_f = fold(params["w2"], params["l2"], h_pad)
    mu1_p = jnp.pad(params["mu1"], ((0, 0), (0, h_pad - H)))
    mu2_p = jnp.pad(params["mu2"], ((0, 0), (0, h_pad - H)))

    # ---- pack g_per graphs per grid step: rows stacked, adjacency block-diagonal ----
    # NOTE: if N % SUBLANE != 0 the padded node rows become nonzero after the first
    # FIELayer (z = 0 - mu); correctness relies on padded A rows/cols being exactly zero
    # (so garbage never reaches real rows) and on the final slice dropping those rows.
    x_p = jnp.pad(x, ((0, 0), (0, n_pad - N), (0, d_pad - D))).reshape(ng, rows, d_pad)
    a_p = jnp.pad(a, ((0, 0), (0, n_pad - N), (0, n_pad - N)))
    a_grp = a_p.reshape(ng, g_per, n_pad, n_pad)
    a_blk = jnp.einsum("gh,bgij->bgihj",
                       jnp.eye(g_per, dtype=a.dtype), a_grp).reshape(ng, rows, rows)

    def resident(shape):
        # Constant block index -> stays in VMEM across grid steps. Single-buffer it
        # (negligible at HIDDEN=32, real headroom when HIDDEN grows / on v7x's 64 MiB VMEM).
        idx = lambda g: (0,) * len(shape)
        try:
            return pl.BlockSpec(shape, idx, pipeline_mode=pl.Buffered(1))
        except (TypeError, AttributeError):
            return pl.BlockSpec(shape, idx)

    # Cost estimate from the actual padded shapes.
    flops = ng * (2 * rows * d_pad * h_pad + 2 * rows * h_pad * h_pad
                  + NUM_LAYERS * (2 * rows * rows * h_pad + 4 * rows * h_pad * h_pad))
    transcendentals = ng * (NUM_LAYERS + 1) * rows * (h_pad + 1)  # exp per elem + rsqrt per row
    bytes_accessed = 4 * int(x_p.size + a_blk.size + w0_t.size + l0_f.size + w1_t.size
                             + l1_f.size + w2_t.size + l2_f.size + mu1_p.size + mu2_p.size
                             + ng * rows * h_pad)

    out = pl.pallas_call(
        supfie_kernel,
        out_shape=jax.ShapeDtypeStruct((ng, rows, h_pad), jnp.float32),
        grid_spec=pltpu.PrefetchScalarGridSpec(
            num_scalar_prefetch=0,
            grid=(ng,),
            in_specs=[
                pl.BlockSpec((None, rows, d_pad), lambda g: (g, 0, 0)),   # x (per group)
                pl.BlockSpec((None, rows, rows), lambda g: (g, 0, 0)),    # block-diag A
                resident((d_pad, h_pad)), resident((h_pad, h_pad)),       # in_head W^T, L
                resident((1, h_pad)), resident((h_pad, h_pad)), resident((h_pad, h_pad)),
                resident((1, h_pad)), resident((h_pad, h_pad)), resident((h_pad, h_pad)),
            ],
            out_specs=pl.BlockSpec((None, rows, h_pad), lambda g: (g, 0, 0)),
        ),
        compiler_params=pltpu.CompilerParams(
            dimension_semantics=("parallel",),
            vmem_limit_bytes=32 * 1024 * 1024),
        cost_estimate=pl.CostEstimate(flops=flops,
                                      transcendentals=transcendentals,
                                      bytes_accessed=bytes_accessed),
    )(x_p, a_blk, w0_t, l0_f, mu1_p, w1_t, l1_f, mu2_p, w2_t, l2_f)

    # TODO(synk): for graphs where the dense (rows, rows) adjacency block no longer fits
    # in VMEM (roughly >~1.5k nodes on v7x's 64 MiB VMEM, ~2-2.8k on v5e/v6e), split the
    # A@H aggregation into its own row/col-blocked pallas_call.
    return out.reshape(B, n_pad, h_pad)[:, :N, :H]


def reference_forward(x, a, params):
    """Pure-JAX reference: unpadded, unfolded math (same semantics)."""
    def kmap(h, w, l):
        norm = jnp.sqrt(jnp.sum(h * h, axis=-1, keepdims=True))
        hu = h / jnp.maximum(norm, EPS)
        k = jnp.exp(ALPHA * (hu @ w.T - 1.0))
        return norm * (k @ l)

    h = kmap(x, params["w0"], params["l0"])
    for mu, w, l in ((params["mu1"], params["w1"], params["l1"]),
                     (params["mu2"], params["w2"], params["l2"])):
        agg = jnp.matmul(a, h)
        z = agg - mu
        h = kmap(z, w, l) + h
    return h


def init_params(key, input_size, hidden_size):
    """Deterministic synthetic parameters (shapes from SupFIENet.__init__)."""
    keys = jax.random.split(key, 5)

    def kernel_layer_params(k, d_in, d_out):
        w = jax.random.normal(k, (d_out, d_in), jnp.float32)
        w = w / jnp.maximum(jnp.linalg.norm(w, axis=-1, keepdims=True), EPS)
        gram = jnp.exp(ALPHA * (w @ w.T - 1.0))
        evals, evecs = jnp.linalg.eigh(gram)
        inv_sqrt = (evecs * (1.0 / jnp.sqrt(jnp.maximum(evals, 1e-4)))) @ evecs.T
        return w.astype(jnp.float32), inv_sqrt.astype(jnp.float32)

    w0, l0 = kernel_layer_params(keys[0], input_size, hidden_size)
    w1, l1 = kernel_layer_params(keys[1], hidden_size, hidden_size)
    w2, l2 = kernel_layer_params(keys[2], hidden_size, hidden_size)
    mu1 = 0.1 * jax.random.normal(keys[3], (1, hidden_size), jnp.float32)
    mu2 = 0.1 * jax.random.normal(keys[4], (1, hidden_size), jnp.float32)
    return dict(w0=w0, l0=l0, w1=w1, l1=l1, w2=w2, l2=l2, mu1=mu1, mu2=mu2)


if __name__ == "__main__":
    key = jax.random.PRNGKey(0)
    kx, ka, kp = jax.random.split(key, 3)

    # 8 small graphs; packed 4-per-grid-step (two 64-row slabs, block-diagonal adjacency).
    B, N, INPUT_SIZE, HIDDEN = 8, 16, 8, 32
    x = jax.random.normal(kx, (B, N, INPUT_SIZE), jnp.float32)

    # Per-graph dense row-normalised adjacency: undirected ring + random extra edges + self loops.
    src = jnp.arange(N)
    dst = (src + 1) % N
    ring = jnp.zeros((N, N), jnp.float32).at[src, dst].set(1.0).at[dst, src].set(1.0)
    extra = (jax.random.uniform(ka, (B, N, N)) < 0.15).astype(jnp.float32)
    extra = jnp.maximum(extra, jnp.transpose(extra, (0, 2, 1)))
    adj = jnp.minimum(ring[None] + extra + jnp.eye(N, dtype=jnp.float32)[None], 1.0)
    a = adj / jnp.sum(adj, axis=-1, keepdims=True)

    params = init_params(kp, INPUT_SIZE, HIDDEN)

    out = supfie_forward(x, a, params)
    out = jax.block_until_ready(out)

    ref = reference_forward(x, a, params)
    assert out.shape == (B, N, HIDDEN)
    assert float(jnp.max(jnp.abs(out - ref))) < 2e-3, "Pallas kernel mismatch vs reference"

    print("KERNEL_OK")
</pallas_src>

<mosaic_0001>
module attributes {stable_mosaic.version = 11 : i64} {
  func.func @supfie_kernel(%arg0: i32, %arg1: memref<1x64x128xf32, #tpu.memory_space<vmem>>, %arg2: memref<1x64x64xf32, #tpu.memory_space<vmem>>, %arg3: memref<128x128xf32, #tpu.memory_space<vmem>>, %arg4: memref<128x128xf32, #tpu.memory_space<vmem>>, %arg5: memref<1x128xf32, #tpu.memory_space<vmem>>, %arg6: memref<128x128xf32, #tpu.memory_space<vmem>>, %arg7: memref<128x128xf32, #tpu.memory_space<vmem>>, %arg8: memref<1x128xf32, #tpu.memory_space<vmem>>, %arg9: memref<128x128xf32, #tpu.memory_space<vmem>>, %arg10: memref<128x128xf32, #tpu.memory_space<vmem>>, %arg11: memref<1x64x128xf32, #tpu.memory_space<vmem>>) attributes {dimension_semantics = [#tpu.dimension_semantics<parallel>], iteration_bounds = array<i64: 2>, scalar_prefetch = 0 : i64, scratch_operands = 0 : i64, tpu.core_type = #tpu.core_type<tc>, window_params = [{transform_indices = @transform_0, window_bounds = array<i64: 1, 64, 128>}, {transform_indices = @transform_1, window_bounds = array<i64: 1, 64, 64>}, {pipeline_mode = #tpu.pipeline_mode<synchronous>, transform_indices = @transform_2, window_bounds = array<i64: 128, 128>}, {pipeline_mode = #tpu.pipeline_mode<synchronous>, transform_indices = @transform_3, window_bounds = array<i64: 128, 128>}, {pipeline_mode = #tpu.pipeline_mode<synchronous>, transform_indices = @transform_4, window_bounds = array<i64: 1, 128>}, {pipeline_mode = #tpu.pipeline_mode<synchronous>, transform_indices = @transform_5, window_bounds = array<i64: 128, 128>}, {pipeline_mode = #tpu.pipeline_mode<synchronous>, transform_indices = @transform_6, window_bounds = array<i64: 128, 128>}, {pipeline_mode = #tpu.pipeline_mode<synchronous>, transform_indices = @transform_7, window_bounds = array<i64: 1, 128>}, {pipeline_mode = #tpu.pipeline_mode<synchronous>, transform_indices = @transform_8, window_bounds = array<i64: 128, 128>}, {pipeline_mode = #tpu.pipeline_mode<synchronous>, transform_indices = @transform_9, window_bounds = array<i64: 128, 128>}, {transform_indices = @transform_10, window_bounds = array<i64: 1, 64, 128>}]} {
    %c0 = arith.constant 0 : index
    %c0_0 = arith.constant 0 : index
    %c0_1 = arith.constant 0 : index
    %0 = vector.load %arg1[%c0, %c0_0, %c0_1] : memref<1x64x128xf32, #tpu.memory_space<vmem>>, vector<1x64x128xf32>
    %1 = vector.shape_cast %0 : vector<1x64x128xf32> to vector<64x128xf32>
    %c0_2 = arith.constant 0 : index
    %c0_3 = arith.constant 0 : index
    %c0_4 = arith.constant 0 : index
    %2 = vector.load %arg2[%c0_2, %c0_3, %c0_4] : memref<1x64x64xf32, #tpu.memory_space<vmem>>, vector<1x64x64xf32>
    %3 = vector.shape_cast %2 : vector<1x64x64xf32> to vector<64x64xf32>
    %c0_5 = arith.constant 0 : index
    %c0_6 = arith.constant 0 : index
    %4 = vector.load %arg3[%c0_5, %c0_6] : memref<128x128xf32, #tpu.memory_space<vmem>>, vector<128x128xf32>
    %c0_7 = arith.constant 0 : index
    %c0_8 = arith.constant 0 : index
    %5 = vector.load %arg4[%c0_7, %c0_8] : memref<128x128xf32, #tpu.memory_space<vmem>>, vector<128x128xf32>
    %6 = arith.mulf %1, %1 : vector<64x128xf32>
    %cst = arith.constant dense<0.000000e+00> : vector<64xf32>
    %7 = vector.multi_reduction <add>, %6, %cst [1] : vector<64x128xf32> to vector<64xf32>
    %8 = vector.shape_cast %7 : vector<64xf32> to vector<64x1xf32>
    %cst_9 = arith.constant 9.99999996E-13 : f32
    %9 = vector.broadcast %cst_9 : f32 to vector<64x1xf32>
    %10 = arith.addf %8, %9 : vector<64x1xf32>
    %11 = math.rsqrt %10 : vector<64x1xf32>
    %12 = vector.broadcast %11 : vector<64x1xf32> to vector<64x128xf32>
    %13 = arith.mulf %1, %12 : vector<64x128xf32>
    %14 = arith.mulf %8, %11 : vector<64x1xf32>
    %cst_10 = arith.constant dense<0.000000e+00> : vector<64x128xf32>
    %15 = tpu.matmul %13, %4, %cst_10 {dimension_numbers = #tpu.dot_dimension_numbers<[1], [0], [0], [1], [0, 0, 1, 1], [], []>} : vector<64x128xf32>, vector<128x128xf32>, vector<64x128xf32> -> vector<64x128xf32>
    %16 = math.exp %15 : vector<64x128xf32>
    %cst_11 = arith.constant dense<0.000000e+00> : vector<64x128xf32>
    %17 = tpu.matmul %16, %5, %cst_11 {dimension_numbers = #tpu.dot_dimension_numbers<[1], [0], [0], [1], [0, 0, 1, 1], [], []>} : vector<64x128xf32>, vector<128x128xf32>, vector<64x128xf32> -> vector<64x128xf32>
    %18 = vector.broadcast %14 : vector<64x1xf32> to vector<64x128xf32>
    %19 = arith.mulf %18, %17 : vector<64x128xf32>
    %cst_12 = arith.constant dense<0.000000e+00> : vector<64x128xf32>
    %20 = tpu.matmul %3, %19, %cst_12 {dimension_numbers = #tpu.dot_dimension_numbers<[1], [0], [0], [1], [0, 0, 1, 1], [], []>} : vector<64x64xf32>, vector<64x128xf32>, vector<64x128xf32> -> vector<64x128xf32>
    %c0_13 = arith.constant 0 : index
    %c0_14 = arith.constant 0 : index
    %21 = vector.load %arg5[%c0_13, %c0_14] : memref<1x128xf32, #tpu.memory_space<vmem>>, vector<1x128xf32>
    %22 = vector.broadcast %21 : vector<1x128xf32> to vector<64x128xf32>
    %23 = arith.subf %20, %22 : vector<64x128xf32>
    %c0_15 = arith.constant 0 : index
    %c0_16 = arith.constant 0 : index
    %24 = vector.load %arg6[%c0_15, %c0_16] : memref<128x128xf32, #tpu.memory_space<vmem>>, vector<128x128xf32>
    %c0_17 = arith.constant 0 : index
    %c0_18 = arith.constant 0 : index
    %25 = vector.load %arg7[%c0_17, %c0_18] : memref<128x128xf32, #tpu.memory_space<vmem>>, vector<128x128xf32>
    %26 = arith.mulf %23, %23 : vector<64x128xf32>
    %cst_19 = arith.constant dense<0.000000e+00> : vector<64xf32>
    %27 = vector.multi_reduction <add>, %26, %cst_19 [1] : vector<64x128xf32> to vector<64xf32>
    %28 = vector.shape_cast %27 : vector<64xf32> to vector<64x1xf32>
    %cst_20 = arith.constant 9.99999996E-13 : f32
    %29 = vector.broadcast %cst_20 : f32 to vector<64x1xf32>
    %30 = arith.addf %28, %29 : vector<64x1xf32>
    %31 = math.rsqrt %30 : vector<64x1xf32>
    %32 = vector.broadcast %31 : vector<64x1xf32> to vector<64x128xf32>
    %33 = arith.mulf %23, %32 : vector<64x128xf32>
    %34 = arith.mulf %28, %31 : vector<64x1xf32>
    %cst_21 = arith.constant dense<0.000000e+00> : vector<64x128xf32>
    %35 = tpu.matmul %33, %24, %cst_21 {dimension_numbers = #tpu.dot_dimension_numbers<[1], [0], [0], [1], [0, 0, 1, 1], [], []>} : vector<64x128xf32>, vector<128x128xf32>, vector<64x128xf32> -> vector<64x128xf32>
    %36 = math.exp %35 : vector<64x128xf32>
    %cst_22 = arith.constant dense<0.000000e+00> : vector<64x128xf32>
    %37 = tpu.matmul %36, %25, %cst_22 {dimension_numbers = #tpu.dot_dimension_numbers<[1], [0], [0], [1], [0, 0, 1, 1], [], []>} : vector<64x128xf32>, vector<128x128xf32>, vector<64x128xf32> -> vector<64x128xf32>
    %38 = vector.broadcast %34 : vector<64x1xf32> to vector<64x128xf32>
    %39 = arith.mulf %38, %37 : vector<64x128xf32>
    %40 = arith.addf %39, %19 : vector<64x128xf32>
    %cst_23 = arith.constant dense<0.000000e+00> : vector<64x128xf32>
    %41 = tpu.matmul %3, %40, %cst_23 {dimension_numbers = #tpu.dot_dimension_numbers<[1], [0], [0], [1], [0, 0, 1, 1], [], []>} : vector<64x64xf32>, vector<64x128xf32>, vector<64x128xf32> -> vector<64x128xf32>
    %c0_24 = arith.constant 0 : index
    %c0_25 = arith.constant 0 : index
    %42 = vector.load %arg8[%c0_24, %c0_25] : memref<1x128xf32, #tpu.memory_space<vmem>>, vector<1x128xf32>
    %43 = vector.broadcast %42 : vector<1x128xf32> to vector<64x128xf32>
    %44 = arith.subf %41, %43 : vector<64x128xf32>
    %c0_26 = arith.constant 0 : index
    %c0_27 = arith.constant 0 : index
    %45 = vector.load %arg9[%c0_26, %c0_27] : memref<128x128xf32, #tpu.memory_space<vmem>>, vector<128x128xf32>
    %c0_28 = arith.constant 0 : index
    %c0_29 = arith.constant 0 : index
    %46 = vector.load %arg10[%c0_28, %c0_29] : memref<128x128xf32, #tpu.memory_space<vmem>>, vector<128x128xf32>
    %47 = arith.mulf %44, %44 : vector<64x128xf32>
    %cst_30 = arith.constant dense<0.000000e+00> : vector<64xf32>
    %48 = vector.multi_reduction <add>, %47, %cst_30 [1] : vector<64x128xf32> to vector<64xf32>
    %49 = vector.shape_cast %48 : vector<64xf32> to vector<64x1xf32>
    %cst_31 = arith.constant 9.99999996E-13 : f32
    %50 = vector.broadcast %cst_31 : f32 to vector<64x1xf32>
    %51 = arith.addf %49, %50 : vector<64x1xf32>
    %52 = math.rsqrt %51 : vector<64x1xf32>
    %53 = vector.broadcast %52 : vector<64x1xf32> to vector<64x128xf32>
    %54 = arith.mulf %44, %53 : vector<64x128xf32>
    %55 = arith.mulf %49, %52 : vector<64x1xf32>
    %cst_32 = arith.constant dense<0.000000e+00> : vector<64x128xf32>
    %56 = tpu.matmul %54, %45, %cst_32 {dimension_numbers = #tpu.dot_dimension_numbers<[1], [0], [0], [1], [0, 0, 1, 1], [], []>} : vector<64x128xf32>, vector<128x128xf32>, vector<64x128xf32> -> vector<64x128xf32>
    %57 = math.exp %56 : vector<64x128xf32>
    %cst_33 = arith.constant dense<0.000000e+00> : vector<64x128xf32>
    %58 = tpu.matmul %57, %46, %cst_33 {dimension_numbers = #tpu.dot_dimension_numbers<[1], [0], [0], [1], [0, 0, 1, 1], [], []>} : vector<64x128xf32>, vector<128x128xf32>, vector<64x128xf32> -> vector<64x128xf32>
    %59 = vector.broadcast %55 : vector<64x1xf32> to vector<64x128xf32>
    %60 = arith.mulf %59, %58 : vector<64x128xf32>
    %61 = arith.addf %60, %40 : vector<64x128xf32>
    %c0_34 = arith.constant 0 : index
    %c0_35 = arith.constant 0 : index
    %c0_36 = arith.constant 0 : index
    %62 = vector.load %arg11[%c0_34, %c0_35, %c0_36] : memref<1x64x128xf32, #tpu.memory_space<vmem>>, vector<1x64x128xf32>
    %63 = vector.shape_cast %62 : vector<1x64x128xf32> to vector<64x128xf32>
    %64 = vector.shape_cast %61 : vector<64x128xf32> to vector<1x64x128xf32>
    tpu.vector_store %arg11[%c0_34, %c0_35, %c0_36], %64 {strides = array<i32>} : memref<1x64x128xf32, #tpu.memory_space<vmem>>, vector<1x64x128xf32>,
    return
  }
  func.func @transform_0(%arg0: i32) -> (i32, i32, i32) {
    %c0_i32 = arith.constant 0 : i32
    %c0_i32_0 = arith.constant 0 : i32
    %c0_i32_1 = arith.constant 0 : i32
    return %arg0, %c0_i32, %c0_i32_0 : i32, i32, i32
  }
  func.func @transform_1(%arg0: i32) -> (i32, i32, i32) {
    %c0_i32 = arith.constant 0 : i32
    %c0_i32_0 = arith.constant 0 : i32
    %c0_i32_1 = arith.constant 0 : i32
    return %arg0, %c0_i32, %c0_i32_0 : i32, i32, i32
  }
  func.func @transform_2(%arg0: i32) -> (i32, i32) {
    %c0_i32 = arith.constant 0 : i32
    %c0_i32_0 = arith.constant 0 : i32
    %c0_i32_1 = arith.constant 0 : i32
    return %c0_i32, %c0_i32_0 : i32, i32
  }
  func.func @transform_3(%arg0: i32) -> (i32, i32) {
    %c0_i32 = arith.constant 0 : i32
    %c0_i32_0 = arith.constant 0 : i32
    %c0_i32_1 = arith.constant 0 : i32
    return %c0_i32, %c0_i32_0 : i32, i32
  }
  func.func @transform_4(%arg0: i32) -> (i32, i32) {
    %c0_i32 = arith.constant 0 : i32
    %c0_i32_0 = arith.constant 0 : i32
    %c0_i32_1 = arith.constant 0 : i32
    return %c0_i32, %c0_i32_0 : i32, i32
  }
  func.func @transform_5(%arg0: i32) -> (i32, i32) {
    %c0_i32 = arith.constant 0 : i32
    %c0_i32_0 = arith.constant 0 : i32
    %c0_i32_1 = arith.constant 0 : i32
    return %c0_i32, %c0_i32_0 : i32, i32
  }
  func.func @transform_6(%arg0: i32) -> (i32, i32) {
    %c0_i32 = arith.constant 0 : i32
    %c0_i32_0 = arith.constant 0 : i32
    %c0_i32_1 = arith.constant 0 : i32
    return %c0_i32, %c0_i32_0 : i32, i32
  }
  func.func @transform_7(%arg0: i32) -> (i32, i32) {
    %c0_i32 = arith.constant 0 : i32
    %c0_i32_0 = arith.constant 0 : i32
    %c0_i32_1 = arith.constant 0 : i32
    return %c0_i32, %c0_i32_0 : i32, i32
  }
  func.func @transform_8(%arg0: i32) -> (i32, i32) {
    %c0_i32 = arith.constant 0 : i32
    %c0_i32_0 = arith.constant 0 : i32
    %c0_i32_1 = arith.constant 0 : i32
    return %c0_i32, %c0_i32_0 : i32, i32
  }
  func.func @transform_9(%arg0: i32) -> (i32, i32) {
    %c0_i32 = arith.constant 0 : i32
    %c0_i32_0 = arith.constant 0 : i32
    %c0_i32_1 = arith.constant 0 : i32
    return %c0_i32, %c0_i32_0 : i32, i32
  }
  func.func @transform_10(%arg0: i32) -> (i32, i32, i32) {
    %c0_i32 = arith.constant 0 : i32
    %c0_i32_0 = arith.constant 0 : i32
    %c0_i32_1 = arith.constant 0 : i32
    return %arg0, %c0_i32, %c0_i32_0 : i32, i32, i32
  }
}

</mosaic_0001>

<llo_original>
// kernel: tpu_custom_call.1
$region0: #{tpu_custom_call.1}
  #allocation0 [shape = 'u32[]', space=smem, size = 0x4, offset = 0x4, fixed_abs, tag = 'smem constant byte address 0x4 - core index']
  #allocation1 [shape = 'u32[72,128]{1,0:T(1,128)}', space=vmem, size = 0x9000, scoped, tag = 'internal scratch']
  %s0 = inlined_call_operand.hbm [shape: f32[2,64,128], index: 0, kind: input, shape index: {}]
  %s1 = inlined_call_operand.hbm [shape: f32[2,64,64], index: 1, kind: input, shape index: {}]
  %s2 = inlined_call_operand.hbm [shape: f32[128,128], index: 2, kind: input, shape index: {}]
  %s3 = inlined_call_operand.hbm [shape: f32[128,128], index: 3, kind: input, shape index: {}]
  %s4 = inlined_call_operand.vmem [shape: f32[1,128], index: 4, kind: input, shape index: {}]
  %s5 = inlined_call_operand.hbm [shape: f32[128,128], index: 5, kind: input, shape index: {}]
  %s6 = inlined_call_operand.hbm [shape: f32[128,128], index: 6, kind: input, shape index: {}]
  %s7 = inlined_call_operand.vmem [shape: f32[1,128], index: 7, kind: input, shape index: {}]
  %s8 = inlined_call_operand.hbm [shape: f32[128,128], index: 8, kind: input, shape index: {}]
  %s9 = inlined_call_operand.hbm [shape: f32[128,128], index: 9, kind: input, shape index: {}]
  %s10 = inlined_call_operand.hbm [shape: f32[2,64,128], index: 10, kind: output, shape index: {}]
  %s11 = sld [smem:[#allocation0]]
  $region105: #{tpu_custom_call.1} parent=0
    _
  %s13 = ssub.s32 1, %s11
  %s14 = scalar_select 0, %s13, %s11
  $region1: #{tpu_custom_call.1} parent=0
    #allocation2 [shape = 'u8[65536]{0}', space=vmem, size = 0x10000, scoped, tag = 'input window, operand 0']
    #allocation3 [shape = 's32[2]{0}', space=sflag, size = 0x8, scoped, tag = 'scoped memory for tpu_custom_call.1']
    #allocation4 [shape = 's32[2]{0}', space=sflag, size = 0x8, scoped, tag = 'scoped memory for tpu_custom_call.1']
    #allocation5 [shape = 'u8[65536]{0}', space=vmem, size = 0x10000, scoped, tag = 'input window, operand 1']
    #allocation6 [shape = 's32[2]{0}', space=sflag, size = 0x8, scoped, tag = 'scoped memory for tpu_custom_call.1']
    #allocation7 [shape = 'u8[65536]{0}', space=vmem, size = 0x10000, scoped, tag = 'input window, operand 2, single buffered']
    #allocation8 [shape = 'u8[65536]{0}', space=vmem, size = 0x10000, scoped, tag = 'input window, operand 3, single buffered']
    #allocation9 [shape = 's32[1]{0}', space=sflag, size = 0x4, scoped, tag = 'scoped memory for tpu_custom_call.1']
    #allocation10 [shape = 'u8[65536]{0}', space=vmem, size = 0x10000, scoped, tag = 'input window, operand 5, single buffered']
    #allocation11 [shape = 'u8[65536]{0}', space=vmem, size = 0x10000, scoped, tag = 'input window, operand 6, single buffered']
    #allocation12 [shape = 's32[1]{0}', space=sflag, size = 0x4, scoped, tag = 'scoped memory for tpu_custom_call.1']
    #allocation13 [shape = 'u8[65536]{0}', space=vmem, size = 0x10000, scoped, tag = 'input window, operand 8, single buffered']
    #allocation14 [shape = 'u8[65536]{0}', space=vmem, size = 0x10000, scoped, tag = 'input window, operand 9, single buffered']
    #allocation15 [shape = 's32[1]{0}', space=sflag, size = 0x4, scoped, tag = 'scoped memory for tpu_custom_call.1']
    #allocation16 [shape = 'u8[65536]{0}', space=vmem, size = 0x10000, scoped, tag = 'output window, operand 0']
    %15 = vsyncpa [#allocation3], 0
    %s16 = scalar_lea.sflag [#allocation3], 1
    %17 = vsyncpa %s16, 0
    %18 = vsyncpa [#allocation6], 0
    %s19 = scalar_lea.sflag [#allocation6], 1
    %20 = vsyncpa %s19, 0
    %21 = vsyncpa [#allocation9], 0
    %22 = vsyncpa [#allocation12], 0
    %23 = vsyncpa [#allocation15], 0
    %24 = vsyncpa [#allocation4], 0
    %s25 = scalar_lea.sflag [#allocation4], 1
    %26 = vsyncpa %s25, 0
    loop: start=0, step=1, limit=4
    $region2: #{tpu_custom_call.1} parent=1 // loop_pre_header
      _
    $region3: #{tpu_custom_call.1} parent=1 // loop_header
      %s28 = sphi 0, %s32
      %p29 = scmp.ge.s32.totalorder %s28, 4
      %s38 = sphi 0, %s40
      %s41 = sphi 0, %s38
      %s42 = sphi 0, %s41
      %s58 = sphi 0, %s42
      %s64 = sphi 0, %s66
      %s67 = sphi 0, %s64
      %s68 = sphi 0, %s67
      %s84 = sphi 0, %s68
      %s88 = sphi 0, %s88
      %s90 = sphi 0, %s88
      %s91 = sphi 0, %s90
      %s105 = sphi 0, %s91
      %s109 = sphi 0, %s109
      %s111 = sphi 0, %s109
      %s112 = sphi 0, %s111
      %s126 = sphi 0, %s112
      %s130 = sphi 0, %s130
      %s132 = sphi 0, %s130
      %s133 = sphi 0, %s132
      %s147 = sphi 0, %s133
      %s151 = sphi 0, %s151
      %s153 = sphi 0, %s151
      %s154 = sphi 0, %s153
      %s168 = sphi 0, %s154
      %s172 = sphi 0, %s172
      %s174 = sphi 0, %s172
      %s175 = sphi 0, %s174
      %s189 = sphi 0, %s175
      %s193 = sphi 0, %s193
      %s195 = sphi 0, %s193
      %s196 = sphi 0, %s195
      %s210 = sphi 0, %s196
      %s214 = sphi 0, %s214
      %s216 = sphi 0, %s214
      %s217 = sphi 0, %s216
      %s231 = sphi 0, %s217
      %s235 = sphi 0, %s235
      %s237 = sphi 0, %s235
      %s238 = sphi 0, %s237
      %s252 = sphi 0, %s238
      %s258 = sphi 0, %s260
      %s261 = sphi 0, %s258
      %s262 = sphi 0, %s261
      %s278 = sphi 0, %s262
    $region4: #{tpu_custom_call.1} parent=1 // loop_header_branch
      %31 = sbr.rel (%p29) target = $region8
    $region5: #{tpu_custom_call.1} parent=1 // loop_body
      %s33 = ssub.s32 %s28, 1
      %s34 = ssub.s32 %s28, 2
      %s35 = sadd.s32 %s28, 1
      %s36 = ssub.s32 %s28, %s35
      %p37 = scmp.eq.s32.totalorder %s36, 0
      %s39 = sadd.s32 %s38, 1
      %s40 = scalar_select %p37, %s38, %s39
      %p43 = pneg %p37
      %p44 = scmp.eq.s32.totalorder %s28, 1
      %p45 = por %p43, %p44
      %p46 = scmp.ne.s32.totalorder %s38, %s41
      %p47 = scmp.eq.s32.totalorder %s28, 0
      %p48 = por %p46, %p47
      %p49 = scmp.ne.s32.totalorder %s38, %s41
      %p50 = scmp.eq.s32.totalorder %s33, 1
      %p51 = por %p49, %p50
      %p52 = scmp.ne.s32.totalorder %s41, %s42
      %p53 = scmp.eq.s32.totalorder %s33, 0
      %p54 = por %p52, %p53
      %p55 = scmp.ne.s32.totalorder %s41, %s42
      %p56 = scmp.eq.s32.totalorder %s34, 1
      %p57 = por %p55, %p56
      %p59 = scmp.ne.s32.totalorder %s42, %s58
      %p60 = scmp.eq.s32.totalorder %s34, 0
      %p61 = por %p59, %p60
      %s62 = ssub.s32 %s28, %s35
      %p63 = scmp.eq.s32.totalorder %s62, 0
      %s65 = sadd.s32 %s64, 1
      %s66 = scalar_select %p63, %s64, %s65
      %p69 = pneg %p63
      %p70 = scmp.eq.s32.totalorder %s28, 1
      %p71 = por %p69, %p70
      %p72 = scmp.ne.s32.totalorder %s64, %s67
      %p73 = scmp.eq.s32.totalorder %s28, 0
      %p74 = por %p72, %p73
      %p75 = scmp.ne.s32.totalorder %s64, %s67
      %p76 = scmp.eq.s32.totalorder %s33, 1
      %p77 = por %p75, %p76
      %p78 = scmp.ne.s32.totalorder %s67, %s68
      %p79 = scmp.eq.s32.totalorder %s33, 0
      %p80 = por %p78, %p79
      %p81 = scmp.ne.s32.totalorder %s67, %s68
      %p82 = scmp.eq.s32.totalorder %s34, 1
      %p83 = por %p81, %p82
      %p85 = scmp.ne.s32.totalorder %s68, %s84
      %p86 = scmp.eq.s32.totalorder %s34, 0
      %p87 = por %p85, %p86
      %s89 = sadd.s32 %s88, 1
      %p92 = scmp.eq.s32.totalorder %s28, 1
      %p93 = scmp.ne.s32.totalorder %s88, %s90
      %p94 = scmp.eq.s32.totalorder %s28, 0
      %p95 = por %p93, %p94
      %p96 = scmp.ne.s32.totalorder %s88, %s90
      %p97 = scmp.eq.s32.totalorder %s33, 1
      %p98 = por %p96, %p97
      %p99 = scmp.ne.s32.totalorder %s90, %s91
      %p100 = scmp.eq.s32.totalorder %s33, 0
      %p101 = por %p99, %p100
      %p102 = scmp.ne.s32.totalorder %s90, %s91
      %p103 = scmp.eq.s32.totalorder %s34, 1
      %p104 = por %p102, %p103
      %p106 = scmp.ne.s32.totalorder %s91, %s105
      %p107 = scmp.eq.s32.totalorder %s34, 0
      %p108 = por %p106, %p107
      %s110 = sadd.s32 %s109, 1
      %p113 = scmp.eq.s32.totalorder %s28, 1
      %p114 = scmp.ne.s32.totalorder %s109, %s111
      %p115 = scmp.eq.s32.totalorder %s28, 0
      %p116 = por %p114, %p115
      %p117 = scmp.ne.s32.totalorder %s109, %s111
      %p118 = scmp.eq.s32.totalorder %s33, 1
      %p119 = por %p117, %p118
      %p120 = scmp.ne.s32.totalorder %s111, %s112
      %p121 = scmp.eq.s32.totalorder %s33, 0
      %p122 = por %p120, %p121
      %p123 = scmp.ne.s32.totalorder %s111, %s112
      %p124 = scmp.eq.s32.totalorder %s34, 1
      %p125 = por %p123, %p124
      %p127 = scmp.ne.s32.totalorder %s112, %s126
      %p128 = scmp.eq.s32.totalorder %s34, 0
      %p129 = por %p127, %p128
      %s131 = sadd.s32 %s130, 1
      %p134 = scmp.eq.s32.totalorder %s28, 1
      %p135 = scmp.ne.s32.totalorder %s130, %s132
      %p136 = scmp.eq.s32.totalorder %s28, 0
      %p137 = por %p135, %p136
      %p138 = scmp.ne.s32.totalorder %s130, %s132
      %p139 = scmp.eq.s32.totalorder %s33, 1
      %p140 = por %p138, %p139
      %p141 = scmp.ne.s32.totalorder %s132, %s133
      %p142 = scmp.eq.s32.totalorder %s33, 0
      %p143 = por %p141, %p142
      %p144 = scmp.ne.s32.totalorder %s132, %s133
      %p145 = scmp.eq.s32.totalorder %s34, 1
      %p146 = por %p144, %p145
      %p148 = scmp.ne.s32.totalorder %s133, %s147
      %p149 = scmp.eq.s32.totalorder %s34, 0
      %p150 = por %p148, %p149
      %s152 = sadd.s32 %s151, 1
      %p155 = scmp.eq.s32.totalorder %s28, 1
      %p156 = scmp.ne.s32.totalorder %s151, %s153
      %p157 = scmp.eq.s32.totalorder %s28, 0
      %p158 = por %p156, %p157
      %p159 = scmp.ne.s32.totalorder %s151, %s153
      %p160 = scmp.eq.s32.totalorder %s33, 1
      %p161 = por %p159, %p160
      %p162 = scmp.ne.s32.totalorder %s153, %s154
      %p163 = scmp.eq.s32.totalorder %s33, 0
      %p164 = por %p162, %p163
      %p165 = scmp.ne.s32.totalorder %s153, %s154
      %p166 = scmp.eq.s32.totalorder %s34, 1
      %p167 = por %p165, %p166
      %p169 = scmp.ne.s32.totalorder %s154, %s168
      %p170 = scmp.eq.s32.totalorder %s34, 0
      %p171 = por %p169, %p170
      %s173 = sadd.s32 %s172, 1
      %p176 = scmp.eq.s32.totalorder %s28, 1
      %p177 = scmp.ne.s32.totalorder %s172, %s174
      %p178 = scmp.eq.s32.totalorder %s28, 0
      %p179 = por %p177, %p178
      %p180 = scmp.ne.s32.totalorder %s172, %s174
      %p181 = scmp.eq.s32.totalorder %s33, 1
      %p182 = por %p180, %p181
      %p183 = scmp.ne.s32.totalorder %s174, %s175
      %p184 = scmp.eq.s32.totalorder %s33, 0
      %p185 = por %p183, %p184
      %p186 = scmp.ne.s32.totalorder %s174, %s175
      %p187 = scmp.eq.s32.totalorder %s34, 1
      %p188 = por %p186, %p187
      %p190 = scmp.ne.s32.totalorder %s175, %s189
      %p191 = scmp.eq.s32.totalorder %s34, 0
      %p192 = por %p190, %p191
      %s194 = sadd.s32 %s193, 1
      %p197 = scmp.eq.s32.totalorder %s28, 1
      %p198 = scmp.ne.s32.totalorder %s193, %s195
      %p199 = scmp.eq.s32.totalorder %s28, 0
      %p200 = por %p198, %p199
      %p201 = scmp.ne.s32.totalorder %s193, %s195
      %p202 = scmp.eq.s32.totalorder %s33, 1
      %p203 = por %p201, %p202
      %p204 = scmp.ne.s32.totalorder %s195, %s196
      %p205 = scmp.eq.s32.totalorder %s33, 0
      %p206 = por %p204, %p205
      %p207 = scmp.ne.s32.totalorder %s195, %s196
      %p208 = scmp.eq.s32.totalorder %s34, 1
      %p209 = por %p207, %p208
      %p211 = scmp.ne.s32.totalorder %s196, %s210
      %p212 = scmp.eq.s32.totalorder %s34, 0
      %p213 = por %p211, %p212
      %s215 = sadd.s32 %s214, 1
      %p218 = scmp.eq.s32.totalorder %s28, 1
      %p219 = scmp.ne.s32.totalorder %s214, %s216
      %p220 = scmp.eq.s32.totalorder %s28, 0
      %p221 = por %p219, %p220
      %p222 = scmp.ne.s32.totalorder %s214, %s216
      %p223 = scmp.eq.s32.totalorder %s33, 1
      %p224 = por %p222, %p223
      %p225 = scmp.ne.s32.totalorder %s216, %s217
      %p226 = scmp.eq.s32.totalorder %s33, 0
      %p227 = por %p225, %p226
      %p228 = scmp.ne.s32.totalorder %s216, %s217
      %p229 = scmp.eq.s32.totalorder %s34, 1
      %p230 = por %p228, %p229
      %p232 = scmp.ne.s32.totalorder %s217, %s231
      %p233 = scmp.eq.s32.totalorder %s34, 0
      %p234 = por %p232, %p233
      %s236 = sadd.s32 %s235, 1
      %p239 = scmp.eq.s32.totalorder %s28, 1
      %p240 = scmp.ne.s32.totalorder %s235, %s237
      %p241 = scmp.eq.s32.totalorder %s28, 0
      %p242 = por %p240, %p241
      %p243 = scmp.ne.s32.totalorder %s235, %s237
      %p244 = scmp.eq.s32.totalorder %s33, 1
      %p245 = por %p243, %p244
      %p246 = scmp.ne.s32.totalorder %s237, %s238
      %p247 = scmp.eq.s32.totalorder %s33, 0
      %p248 = por %p246, %p247
      %p249 = scmp.ne.s32.totalorder %s237, %s238
      %p250 = scmp.eq.s32.totalorder %s34, 1
      %p251 = por %p249, %p250
      %p253 = scmp.ne.s32.totalorder %s238, %s252
      %p254 = scmp.eq.s32.totalorder %s34, 0
      %p255 = por %p253, %p254
      %s256 = ssub.s32 %s28, %s35
      %p257 = scmp.eq.s32.totalorder %s256, 0
      %s259 = sadd.s32 %s258, 1
      %s260 = scalar_select %p257, %s258, %s259
      %p263 = pneg %p257
      %p264 = scmp.eq.s32.totalorder %s28, 1
      %p265 = por %p263, %p264
      %p266 = scmp.ne.s32.totalorder %s258, %s261
      %p267 = scmp.eq.s32.totalorder %s28, 0
      %p268 = por %p266, %p267
      %p269 = scmp.ne.s32.totalorder %s258, %s261
      %p270 = scmp.eq.s32.totalorder %s33, 1
      %p271 = por %p269, %p270
      %p272 = scmp.ne.s32.totalorder %s261, %s262
      %p273 = scmp.eq.s32.totalorder %s33, 0
      %p274 = por %p272, %p273
      %p275 = scmp.ne.s32.totalorder %s261, %s262
      %p276 = scmp.eq.s32.totalorder %s34, 1
      %p277 = por %p275, %p276
      %p279 = scmp.ne.s32.totalorder %s262, %s278
      %p280 = scmp.eq.s32.totalorder %s34, 0
      %p281 = por %p279, %p280
      %p282 = scmp.le.s32.totalorder 1, %s28
      %p283 = scmp.lt.s32.totalorder %s28, 3
      %p284 = pnand %p282, %p283
      %p285 = pneg %p284
      // Predicated region
      $region9: #{tpu_custom_call.1} parent=5 // pred_check
        _
      $region10: #{tpu_custom_call.1} parent=5 // pred_check_branch
        %287 = sbr.rel (%p284) target = $region12
      $region11: #{tpu_custom_call.1} parent=5 // pred_region
        %s288 = ssub.s32 %s28, 1
        // Predicated region
        $region13: #{tpu_custom_call.1} parent=11 // pred_check
          %p289 = pneg %p101
        $region14: #{tpu_custom_call.1} parent=11 // pred_check_branch
          %291 = sbr.rel (%p289) target = $region16
        $region15: #{tpu_custom_call.1} parent=11 // pred_region
          %293 = vsyncadd [#allocation6], 0
          %s294 = sshll.u32 %s2, 4
          %s295 = int_to_ptr.hbm [resolvable:$true] %s294
          %s296 = sshll.u32 [#allocation7], 4
          %s297 = int_to_ptr.vmem [resolvable:$true] %s296
          %302 = dma.hbm_to_vmem [thread:$0]  %s295, 2048, %s297, [#allocation6], 128, 128, 8
        $region16: #{tpu_custom_call.1} parent=11 // pred_fallthru
          _
        // Predicated region
        $region17: #{tpu_custom_call.1} parent=11 // pred_check
          %p303 = pneg %p122
        $region18: #{tpu_custom_call.1} parent=11 // pred_check_branch
          %305 = sbr.rel (%p303) target = $region20
        $region19: #{tpu_custom_call.1} parent=11 // pred_region
          %307 = vsyncadd [#allocation9], 0
          %s308 = sshll.u32 %s3, 4
          %s309 = int_to_ptr.hbm [resolvable:$true] %s308
          %s310 = sshll.u32 [#allocation8], 4
          %s311 = int_to_ptr.vmem [resolvable:$true] %s310
          %316 = dma.hbm_to_vmem [thread:$0]  %s309, 2048, %s311, [#allocation9], 128, 128, 8
        $region20: #{tpu_custom_call.1} parent=11 // pred_fallthru
          _
        // Predicated region
        $region21: #{tpu_custom_call.1} parent=11 // pred_check
          %p317 = pneg %p143
        $region22: #{tpu_custom_call.1} parent=11 // pred_check_branch
          %319 = sbr.rel (%p317) target = $region24
        $region23: #{tpu_custom_call.1} parent=11 // pred_region
          _
        $region24: #{tpu_custom_call.1} parent=11 // pred_fallthru
          _
        // Predicated region
        $region25: #{tpu_custom_call.1} parent=11 // pred_check
          %p320 = pneg %p164
        $region26: #{tpu_custom_call.1} parent=11 // pred_check_branch
          %322 = sbr.rel (%p320) target = $region28
        $region27: #{tpu_custom_call.1} parent=11 // pred_region
          %324 = vsyncadd [#allocation9], 0
          %s325 = sshll.u32 %s5, 4
          %s326 = int_to_ptr.hbm [resolvable:$true] %s325
          %s327 = sshll.u32 [#allocation10], 4
          %s328 = int_to_ptr.vmem [resolvable:$true] %s327
          %333 = dma.hbm_to_vmem [thread:$0]  %s326, 2048, %s328, [#allocation9], 128, 128, 8
        $region28: #{tpu_custom_call.1} parent=11 // pred_fallthru
          _
        // Predicated region
        $region29: #{tpu_custom_call.1} parent=11 // pred_check
          %p334 = pneg %p185
        $region30: #{tpu_custom_call.1} parent=11 // pred_check_branch
          %336 = sbr.rel (%p334) target = $region32
        $region31: #{tpu_custom_call.1} parent=11 // pred_region
          %338 = vsyncadd [#allocation12], 0
          %s339 = sshll.u32 %s6, 4
          %s340 = int_to_ptr.hbm [resolvable:$true] %s339
          %s341 = sshll.u32 [#allocation11], 4
          %s342 = int_to_ptr.vmem [resolvable:$true] %s341
          %347 = dma.hbm_to_vmem [thread:$0]  %s340, 2048, %s342, [#allocation12], 128, 128, 8
        $region32: #{tpu_custom_call.1} parent=11 // pred_fallthru
          _
        // Predicated region
        $region33: #{tpu_custom_call.1} parent=11 // pred_check
          %p348 = pneg %p206
        $region34: #{tpu_custom_call.1} parent=11 // pred_check_branch
          %350 = sbr.rel (%p348) target = $region36
        $region35: #{tpu_custom_call.1} parent=11 // pred_region
          _
        $region36: #{tpu_custom_call.1} parent=11 // pred_fallthru
          _
        // Predicated region
        $region37: #{tpu_custom_call.1} parent=11 // pred_check
          %p351 = pneg %p227
        $region38: #{tpu_custom_call.1} parent=11 // pred_check_branch
          %353 = sbr.rel (%p351) target = $region40
        $region39: #{tpu_custom_call.1} parent=11 // pred_region
          %355 = vsyncadd [#allocation12], 0
          %s356 = sshll.u32 %s8, 4
          %s357 = int_to_ptr.hbm [resolvable:$true] %s356
          %s358 = sshll.u32 [#allocation13], 4
          %s359 = int_to_ptr.vmem [resolvable:$true] %s358
          %364 = dma.hbm_to_vmem [thread:$0]  %s357, 2048, %s359, [#allocation12], 128, 128, 8
        $region40: #{tpu_custom_call.1} parent=11 // pred_fallthru
          _
        // Predicated region
        $region41: #{tpu_custom_call.1} parent=11 // pred_check
          %p365 = pneg %p248
        $region42: #{tpu_custom_call.1} parent=11 // pred_check_branch
          %367 = sbr.rel (%p365) target = $region44
        $region43: #{tpu_custom_call.1} parent=11 // pred_region
          %369 = vsyncadd [#allocation15], 0
          %s370 = sshll.u32 %s9, 4
          %s371 = int_to_ptr.hbm [resolvable:$true] %s370
          %s372 = sshll.u32 [#allocation14], 4
          %s373 = int_to_ptr.vmem [resolvable:$true] %s372
          %378 = dma.hbm_to_vmem [thread:$0]  %s371, 2048, %s373, [#allocation15], 128, 128, 8
        $region44: #{tpu_custom_call.1} parent=11 // pred_fallthru
          _
      $region12: #{tpu_custom_call.1} parent=5 // pred_fallthru
        _
      %p379 = scmp.lt.s32.totalorder %s28, 2
      // Predicated region
      $region45: #{tpu_custom_call.1} parent=5 // pred_check
        %p380 = pneg %p379
      $region46: #{tpu_custom_call.1} parent=5 // pred_check_branch
        %382 = sbr.rel (%p380) target = $region48
      $region47: #{tpu_custom_call.1} parent=5 // pred_region
        // Predicated region
        $region49: #{tpu_custom_call.1} parent=47 // pred_check
          %p383 = pneg %p48
        $region50: #{tpu_custom_call.1} parent=47 // pred_check_branch
          %385 = sbr.rel (%p383) target = $region52
        $region51: #{tpu_custom_call.1} parent=47 // pred_region
          %s386 = sand.u32 %s38, 1
          %s387 = scalar_lea.sflag [#allocation3], %s386
          %s388 = sand.u32 %s38, 1
          %s389 = smul.addr %s388, 64
          %s390 = scalar_lea.vmem [#allocation2], %s389
          %392 = vsyncadd %s387, 0
          %s393 = smul.addr %s28, 8
          %s394 = smul.addr %s393, 8
          %s395 = scalar_lea.hbm %s0, %s394
          %s396 = sshll.u32 %s395, 4
          %s397 = int_to_ptr.hbm [resolvable:$true] %s396
          %s398 = sshll.u32 %s390, 4
          %s399 = int_to_ptr.vmem [resolvable:$true] %s398
          %404 = dma.hbm_to_vmem [thread:$0]  %s397, 1024, %s399, %s387, 128, 128, 8
        $region52: #{tpu_custom_call.1} parent=47 // pred_fallthru
          _
        // Predicated region
        $region53: #{tpu_custom_call.1} parent=47 // pred_check
          %p405 = pneg %p74
        $region54: #{tpu_custom_call.1} parent=47 // pred_check_branch
          %407 = sbr.rel (%p405) target = $region56
        $region55: #{tpu_custom_call.1} parent=47 // pred_region
          %s408 = sand.u32 %s28, 1
          %s409 = scalar_lea.sflag [#allocation6], %s408
          %s410 = sand.u32 %s64, 1
          %s411 = smul.addr %s410, 64
          %s412 = scalar_lea.vmem [#allocation5], %s411
          %414 = vsyncadd %s409, 0
          %s415 = smul.addr %s28, 8
          %s416 = smul.addr %s415, 8
          %s417 = scalar_lea.hbm %s1, %s416
          %s418 = sshll.u32 %s417, 4
          %s419 = int_to_ptr.hbm [resolvable:$true] %s418
          %s420 = sshll.u32 %s412, 4
          %s421 = int_to_ptr.vmem [resolvable:$true] %s420
          %426 = dma.hbm_to_vmem [thread:$0]  %s419, 1024, %s421, %s409, 128, 128, 8
        $region56: #{tpu_custom_call.1} parent=47 // pred_fallthru
          _
      $region48: #{tpu_custom_call.1} parent=5 // pred_fallthru
        _
      %p427 = scmp.le.s32.totalorder 1, %s28
      %p428 = scmp.lt.s32.totalorder %s28, 3
      %p429 = pnand %p427, %p428
      %p430 = pneg %p429
      // Predicated region
      $region57: #{tpu_custom_call.1} parent=5 // pred_check
        _
      $region58: #{tpu_custom_call.1} parent=5 // pred_check_branch
        %432 = sbr.rel (%p429) target = $region60
      $region59: #{tpu_custom_call.1} parent=5 // pred_region
        %s433 = ssub.s32 %s28, 1
        %s434 = sand.u32 %s41, 1
        %s435 = scalar_lea.sflag [#allocation3], %s434
        %s436 = sand.u32 %s41, 1
        %s437 = smul.addr %s436, 64
        %s438 = scalar_lea.vmem [#allocation2], %s437
        // Predicated region
        $region61: #{tpu_custom_call.1} parent=59 // pred_check
          %p439 = pneg %p54
        $region62: #{tpu_custom_call.1} parent=59 // pred_check_branch
          %441 = sbr.rel (%p439) target = $region64
        $region63: #{tpu_custom_call.1} parent=59 // pred_region
          %443 = dma.done %s435, 1024
        $region64: #{tpu_custom_call.1} parent=59 // pred_fallthru
          _
        %s444 = sand.u32 %s33, 1
        %s445 = scalar_lea.sflag [#allocation6], %s444
        %s446 = sand.u32 %s67, 1
        %s447 = smul.addr %s446, 64
        %s448 = scalar_lea.vmem [#allocation5], %s447
        // Predicated region
        $region65: #{tpu_custom_call.1} parent=59 // pred_check
          %p449 = pneg %p80
        $region66: #{tpu_custom_call.1} parent=59 // pred_check_branch
          %451 = sbr.rel (%p449) target = $region68
        $region67: #{tpu_custom_call.1} parent=59 // pred_region
          %453 = dma.done %s445, 1024
        $region68: #{tpu_custom_call.1} parent=59 // pred_fallthru
          _
        // Predicated region
        $region69: #{tpu_custom_call.1} parent=59 // pred_check
          %p454 = pneg %p101
        $region70: #{tpu_custom_call.1} parent=59 // pred_check_branch
          %456 = sbr.rel (%p454) target = $region72
        $region71: #{tpu_custom_call.1} parent=59 // pred_region
          %458 = dma.done [#allocation6], 2048
        $region72: #{tpu_custom_call.1} parent=59 // pred_fallthru
          _
        // Predicated region
        $region73: #{tpu_custom_call.1} parent=59 // pred_check
          %p459 = pneg %p122
        $region74: #{tpu_custom_call.1} parent=59 // pred_check_branch
          %461 = sbr.rel (%p459) target = $region76
        $region75: #{tpu_custom_call.1} parent=59 // pred_region
          %463 = dma.done [#allocation9], 2048
        $region76: #{tpu_custom_call.1} parent=59 // pred_fallthru
          _
        // Predicated region
        $region77: #{tpu_custom_call.1} parent=59 // pred_check
          %p464 = pneg %p164
        $region78: #{tpu_custom_call.1} parent=59 // pred_check_branch
          %466 = sbr.rel (%p464) target = $region80
        $region79: #{tpu_custom_call.1} parent=59 // pred_region
          %468 = dma.done [#allocation9], 2048
        $region80: #{tpu_custom_call.1} parent=59 // pred_fallthru
          _
        // Predicated region
        $region81: #{tpu_custom_call.1} parent=59 // pred_check
          %p469 = pneg %p185
        $region82: #{tpu_custom_call.1} parent=59 // pred_check_branch
          %471 = sbr.rel (%p469) target = $region84
        $region83: #{tpu_custom_call.1} parent=59 // pred_region
          %473 = dma.done [#allocation12], 2048
        $region84: #{tpu_custom_call.1} parent=59 // pred_fallthru
          _
        // Predicated region
        $region85: #{tpu_custom_call.1} parent=59 // pred_check
          %p474 = pneg %p227
        $region86: #{tpu_custom_call.1} parent=59 // pred_check_branch
          %476 = sbr.rel (%p474) target = $region88
        $region87: #{tpu_custom_call.1} parent=59 // pred_region
          %478 = dma.done [#allocation12], 2048
        $region88: #{tpu_custom_call.1} parent=59 // pred_fallthru
          _
        // Predicated region
        $region89: #{tpu_custom_call.1} parent=59 // pred_check
          %p479 = pneg %p248
        $region90: #{tpu_custom_call.1} parent=59 // pred_check_branch
          %481 = sbr.rel (%p479) target = $region92
        $region91: #{tpu_custom_call.1} parent=59 // pred_region
          %483 = dma.done [#allocation15], 2048
        $region92: #{tpu_custom_call.1} parent=59 // pred_fallthru
          _
        %s484 = sand.u32 %s41, 1
        %s485 = scalar_lea.sflag [#allocation3], %s484
        %s486 = sand.u32 %s41, 1
        %s487 = smul.addr %s486, 64
        %s488 = scalar_lea.vmem [#allocation2], %s487
        %p489 = pneg %p54
        %p490 = pneg %p51
        %s491 = sand.u32 %s33, 1
        %s492 = scalar_lea.sflag [#allocation6], %s491
        %s493 = sand.u32 %s67, 1
        %s494 = smul.addr %s493, 64
        %s495 = scalar_lea.vmem [#allocation5], %s494
        %p496 = pneg %p80
        %p497 = pneg %p77
        %p498 = pneg %p101
        %p499 = pneg %p98
        %p500 = pneg %p122
        %p501 = pneg %p119
        %p502 = pneg %p143
        %p503 = pneg %p140
        %p504 = pneg %p164
        %p505 = pneg %p161
        %p506 = pneg %p185
        %p507 = pneg %p182
        %p508 = pneg %p206
        %p509 = pneg %p203
        %p510 = pneg %p227
        %p511 = pneg %p224
        %p512 = pneg %p248
        %p513 = pneg %p245
        %p514 = pneg %p274
        %p515 = pneg %p271
        %s516 = sand.u32 %s261, 1
        %s517 = scalar_lea.sflag [#allocation4], %s516
        %s518 = sand.u32 %s261, 1
        %s519 = smul.addr %s518, 64
        %s520 = scalar_lea.vmem [#allocation16], %s519
        %v521 = vld [vmem:[%s438] sm:$0xff]
        %v522 = vld [vmem:[%s438 + $0x8] sm:$0xff]
        %v523 = vld [vmem:[%s438 + $0x10] sm:$0xff]
        %v524 = vld [vmem:[%s438 + $0x18] sm:$0xff]
        %v525 = vld [vmem:[%s438 + $0x20] sm:$0xff]
        %v526 = vld [vmem:[%s438 + $0x28] sm:$0xff]
        %v527 = vld [vmem:[%s438 + $0x30] sm:$0xff]
        %v528 = vld [vmem:[%s438 + $0x38] sm:$0xff]
        %v529 = vld [vmem:[%s448] sm:$0xff]
        %v530 = vld [vmem:[%s448 + $0x8] sm:$0xff]
        %v531 = vld [vmem:[%s448 + $0x10] sm:$0xff]
        %v532 = vld [vmem:[%s448 + $0x18] sm:$0xff]
        %v533 = vld [vmem:[%s448 + $0x20] sm:$0xff]
        %v534 = vld [vmem:[%s448 + $0x28] sm:$0xff]
        %v535 = vld [vmem:[%s448 + $0x30] sm:$0xff]
        %v536 = vld [vmem:[%s448 + $0x38] sm:$0xff]
        %v537 = vld [vmem:[#allocation7] sm:$0xff]
        %v538 = vld [vmem:[#allocation7 + $0x8] sm:$0xff]
        %v539 = vld [vmem:[#allocation7 + $0x10] sm:$0xff]
        %v540 = vld [vmem:[#allocation7 + $0x18] sm:$0xff]
        %v541 = vld [vmem:[#allocation7 + $0x20] sm:$0xff]
        %v542 = vld [vmem:[#allocation7 + $0x28] sm:$0xff]
        %v543 = vld [vmem:[#allocation7 + $0x30] sm:$0xff]
        %v544 = vld [vmem:[#allocation7 + $0x38] sm:$0xff]
        %v545 = vld [vmem:[#allocation7 + $0x40] sm:$0xff]
        %v546 = vld [vmem:[#allocation7 + $0x48] sm:$0xff]
        %v547 = vld [vmem:[#allocation7 + $0x50] sm:$0xff]
        %v548 = vld [vmem:[#allocation7 + $0x58] sm:$0xff]
        %v549 = vld [vmem:[#allocation7 + $0x60] sm:$0xff]
        %v550 = vld [vmem:[#allocation7 + $0x68] sm:$0xff]
        %v551 = vld [vmem:[#allocation7 + $0x70] sm:$0xff]
        %v552 = vld [vmem:[#allocation7 + $0x78] sm:$0xff]
        %v553 = vld [vmem:[#allocation8] sm:$0xff]
        %v554 = vld [vmem:[#allocation8 + $0x8] sm:$0xff]
        %v555 = vld [vmem:[#allocation8 + $0x10] sm:$0xff]
        %v556 = vld [vmem:[#allocation8 + $0x18] sm:$0xff]
        %v557 = vld [vmem:[#allocation8 + $0x20] sm:$0xff]
        %v558 = vld [vmem:[#allocation8 + $0x28] sm:$0xff]
        %v559 = vld [vmem:[#allocation8 + $0x30] sm:$0xff]
        %v560 = vld [vmem:[#allocation8 + $0x38] sm:$0xff]
        %v561 = vld [vmem:[#allocation8 + $0x40] sm:$0xff]
        %v562 = vld [vmem:[#allocation8 + $0x48] sm:$0xff]
        %v563 = vld [vmem:[#allocation8 + $0x50] sm:$0xff]
        %v564 = vld [vmem:[#allocation8 + $0x58] sm:$0xff]
        %v565 = vld [vmem:[#allocation8 + $0x60] sm:$0xff]
        %v566 = vld [vmem:[#allocation8 + $0x68] sm:$0xff]
        %v567 = vld [vmem:[#allocation8 + $0x70] sm:$0xff]
        %v568 = vld [vmem:[#allocation8 + $0x78] sm:$0xff]
        %v569 = vmul.f32 %v521, %v521
        %v570 = vmul.f32 %v522, %v522
        %v571 = vmul.f32 %v523, %v523
        %v572 = vmul.f32 %v524, %v524
        %v573 = vmul.f32 %v525, %v525
        %v574 = vmul.f32 %v526, %v526
        %v575 = vmul.f32 %v527, %v527
        %v576 = vmul.f32 %v528, %v528
        %577 = vadd.xlane.f32.xlu0 %v569
        %v578 = vpop.xlane.xlu0 %577
        %579 = vadd.xlane.f32.xlu0 %v570
        %v580 = vpop.xlane.xlu0 %579
        %581 = vadd.xlane.f32.xlu0 %v571
        %v582 = vpop.xlane.xlu0 %581
        %583 = vadd.xlane.f32.xlu0 %v572
        %v584 = vpop.xlane.xlu0 %583
        %585 = vadd.xlane.f32.xlu0 %v573
        %v586 = vpop.xlane.xlu0 %585
        %587 = vadd.xlane.f32.xlu0 %v574
        %v588 = vpop.xlane.xlu0 %587
        %589 = vadd.xlane.f32.xlu0 %v575
        %v590 = vpop.xlane.xlu0 %589
        %591 = vadd.xlane.f32.xlu0 %v576
        %v592 = vpop.xlane.xlu0 %591
        %v593 = vadd.f32 %v578, 1e-12
        %v594 = vadd.f32 %v580, 1e-12
        %v595 = vadd.f32 %v582, 1e-12
        %v596 = vadd.f32 %v584, 1e-12
        %v597 = vadd.f32 %v586, 1e-12
        %v598 = vadd.f32 %v588, 1e-12
        %v599 = vadd.f32 %v590, 1e-12
        %v600 = vadd.f32 %v592, 1e-12
        %v601 = vrsqrt.pop %v593
        %v602 = vmul.f32 %v601, %v593
        %v603 = vmul.f32 %v602, %v601
        %v604 = vmul.f32 0.5, %v603
        %v605 = vsub.f32 1.5, %v604
        %v606 = vmul.f32 %v601, %v605
        %vm607 = vweird.f32 %v593
        %vm608 = vweird.f32 %v601
        %vm609 = vmor %vm607, %vm608
        %v610 = vsel %vm609, %v601, %v606
        %v611 = vrsqrt.pop %v594
        %v612 = vmul.f32 %v611, %v594
        %v613 = vmul.f32 %v612, %v611
        %v614 = vmul.f32 0.5, %v613
        %v615 = vsub.f32 1.5, %v614
        %v616 = vmul.f32 %v611, %v615
        %vm617 = vweird.f32 %v594
        %vm618 = vweird.f32 %v611
        %vm619 = vmor %vm617, %vm618
        %v620 = vsel %vm619, %v611, %v616
        %v621 = vrsqrt.pop %v595
        %v622 = vmul.f32 %v621, %v595
        %v623 = vmul.f32 %v622, %v621
        %v624 = vmul.f32 0.5, %v623
        %v625 = vsub.f32 1.5, %v624
        %v626 = vmul.f32 %v621, %v625
        %vm627 = vweird.f32 %v595
        %vm628 = vweird.f32 %v621
        %vm629 = vmor %vm627, %vm628
        %v630 = vsel %vm629, %v621, %v626
        %v631 = vrsqrt.pop %v596
        %v632 = vmul.f32 %v631, %v596
        %v633 = vmul.f32 %v632, %v631
        %v634 = vmul.f32 0.5, %v633
        %v635 = vsub.f32 1.5, %v634
        %v636 = vmul.f32 %v631, %v635
        %vm637 = vweird.f32 %v596
        %vm638 = vweird.f32 %v631
        %vm639 = vmor %vm637, %vm638
        %v640 = vsel %vm639, %v631, %v636
        %v641 = vrsqrt.pop %v597
        %v642 = vmul.f32 %v641, %v597
        %v643 = vmul.f32 %v642, %v641
        %v644 = vmul.f32 0.5, %v643
        %v645 = vsub.f32 1.5, %v644
        %v646 = vmul.f32 %v641, %v645
        %vm647 = vweird.f32 %v597
        %vm648 = vweird.f32 %v641
        %vm649 = vmor %vm647, %vm648
        %v650 = vsel %vm649, %v641, %v646
        %v651 = vrsqrt.pop %v598
        %v652 = vmul.f32 %v651, %v598
        %v653 = vmul.f32 %v652, %v651
        %v654 = vmul.f32 0.5, %v653
        %v655 = vsub.f32 1.5, %v654
        %v656 = vmul.f32 %v651, %v655
        %vm657 = vweird.f32 %v598
        %vm658 = vweird.f32 %v651
        %vm659 = vmor %vm657, %vm658
        %v660 = vsel %vm659, %v651, %v656
        %v661 = vrsqrt.pop %v599
        %v662 = vmul.f32 %v661, %v599
        %v663 = vmul.f32 %v662, %v661
        %v664 = vmul.f32 0.5, %v663
        %v665 = vsub.f32 1.5, %v664
        %v666 = vmul.f32 %v661, %v665
        %vm667 = vweird.f32 %v599
        %vm668 = vweird.f32 %v661
        %vm669 = vmor %vm667, %vm668
        %v670 = vsel %vm669, %v661, %v666
        %v671 = vrsqrt.pop %v600
        %v672 = vmul.f32 %v671, %v600
        %v673 = vmul.f32 %v672, %v671
        %v674 = vmul.f32 0.5, %v673
        %v675 = vsub.f32 1.5, %v674
        %v676 = vmul.f32 %v671, %v675
        %vm677 = vweird.f32 %v600
        %vm678 = vweird.f32 %v671
        %vm679 = vmor %vm677, %vm678
        %v680 = vsel %vm679, %v671, %v676
        %v681 = vmul.f32 %v521, %v610
        %v682 = vmul.f32 %v522, %v620
        %v683 = vmul.f32 %v523, %v630
        %v684 = vmul.f32 %v524, %v640
        %v685 = vmul.f32 %v525, %v650
        %v686 = vmul.f32 %v526, %v660
        %v687 = vmul.f32 %v527, %v670
        %v688 = vmul.f32 %v528, %v680
        %v689 = vmul.f32 %v578, %v610
        %v690 = vmul.f32 %v580, %v620
        %v691 = vmul.f32 %v582, %v630
        %v692 = vmul.f32 %v584, %v640
        %v693 = vmul.f32 %v586, %v650
        %v694 = vmul.f32 %v588, %v660
        %v695 = vmul.f32 %v590, %v670
        %v696 = vmul.f32 %v592, %v680
        %697 = vmatpush.msra.mxu0 %v552
        %698 = vmatpush.msra.mxu0 %v551
        %699 = vmatpush.msra.mxu0 %v550
        %700 = vmatpush.msra.mxu0 %v549
        %701 = vmatpush.msra.mxu0 %v548
        %702 = vmatpush.msra.mxu0 %v547
        %703 = vmatpush.msra.mxu0 %v546
        %704 = vmatpush.msra.mxu0 %v545
        %705 = vmatpush.msra.mxu0 %v544
        %706 = vmatpush.msra.mxu0 %v543
        %707 = vmatpush.msra.mxu0 %v542
        %708 = vmatpush.msra.mxu0 %v541
        %709 = vmatpush.msra.mxu0 %v540
        %710 = vmatpush.msra.mxu0 %v539
        %711 = vmatpush.msra.mxu0 %v538
        %712 = vmatpush.msra.mxu0 %v537
        %713 = vmatmul.f32.gmra.mxu0 %v681
        %v714 = vpop.f32.mrf.mxu0
        %v715 = vadd.f32 0.0, %v714
        %716 = vmatmul.f32.gmra.mxu0 %v682
        %v717 = vpop.f32.mrf.mxu0
        %v718 = vadd.f32 0.0, %v717
        %719 = vmatmul.f32.gmra.mxu0 %v683
        %v720 = vpop.f32.mrf.mxu0
        %v721 = vadd.f32 0.0, %v720
        %722 = vmatmul.f32.gmra.mxu0 %v684
        %v723 = vpop.f32.mrf.mxu0
        %v724 = vadd.f32 0.0, %v723
        %725 = vmatmul.f32.gmra.mxu0 %v685
        %v726 = vpop.f32.mrf.mxu0
        %v727 = vadd.f32 0.0, %v726
        %728 = vmatmul.f32.gmra.mxu0 %v686
        %v729 = vpop.f32.mrf.mxu0
        %v730 = vadd.f32 0.0, %v729
        %731 = vmatmul.f32.gmra.mxu0 %v687
        %v732 = vpop.f32.mrf.mxu0
        %v733 = vadd.f32 0.0, %v732
        %734 = vmatmul.f32.gmra.mxu0 %v688
        %v735 = vpop.f32.mrf.mxu0
        %v736 = vadd.f32 0.0, %v735
        %737 = vdwg.mxu0
        %v738 = vmul.f32 %v715, 1.442695
        %v739 = vpow.pop %v738
        %v740 = vmul.f32 %v718, 1.442695
        %v741 = vpow.pop %v740
        %v742 = vmul.f32 %v721, 1.442695
        %v743 = vpow.pop %v742
        %v744 = vmul.f32 %v724, 1.442695
        %v745 = vpow.pop %v744
        %v746 = vmul.f32 %v727, 1.442695
        %v747 = vpow.pop %v746
        %v748 = vmul.f32 %v730, 1.442695
        %v749 = vpow.pop %v748
        %v750 = vmul.f32 %v733, 1.442695
        %v751 = vpow.pop %v750
        %v752 = vmul.f32 %v736, 1.442695
        %v753 = vpow.pop %v752
        %754 = vmatpush.msra.mxu0 %v568
        %755 = vmatpush.msra.mxu0 %v567
        %756 = vmatpush.msra.mxu0 %v566
        %757 = vmatpush.msra.mxu0 %v565
        %758 = vmatpush.msra.mxu0 %v564
        %759 = vmatpush.msra.mxu0 %v563
        %760 = vmatpush.msra.mxu0 %v562
        %761 = vmatpush.msra.mxu0 %v561
        %762 = vmatpush.msra.mxu0 %v560
        %763 = vmatpush.msra.mxu0 %v559
        %764 = vmatpush.msra.mxu0 %v558
        %765 = vmatpush.msra.mxu0 %v557
        %766 = vmatpush.msra.mxu0 %v556
        %767 = vmatpush.msra.mxu0 %v555
        %768 = vmatpush.msra.mxu0 %v554
        %769 = vmatpush.msra.mxu0 %v553
        %770 = vmatmul.f32.gmra.mxu0 %v739
        %v771 = vpop.f32.mrf.mxu0
        %v772 = vadd.f32 0.0, %v771
        %773 = vmatmul.f32.gmra.mxu0 %v741
        %v774 = vpop.f32.mrf.mxu0
        %v775 = vadd.f32 0.0, %v774
        %776 = vmatmul.f32.gmra.mxu0 %v743
        %v777 = vpop.f32.mrf.mxu0
        %v778 = vadd.f32 0.0, %v777
        %779 = vmatmul.f32.gmra.mxu0 %v745
        %v780 = vpop.f32.mrf.mxu0
        %v781 = vadd.f32 0.0, %v780
        %782 = vmatmul.f32.gmra.mxu0 %v747
        %v783 = vpop.f32.mrf.mxu0
        %v784 = vadd.f32 0.0, %v783
        %785 = vmatmul.f32.gmra.mxu0 %v749
        %v786 = vpop.f32.mrf.mxu0
        %v787 = vadd.f32 0.0, %v786
        %788 = vmatmul.f32.gmra.mxu0 %v751
        %v789 = vpop.f32.mrf.mxu0
        %v790 = vadd.f32 0.0, %v789
        %791 = vmatmul.f32.gmra.mxu0 %v753
        %v792 = vpop.f32.mrf.mxu0
        %v793 = vadd.f32 0.0, %v792
        %794 = vdwg.mxu0
        %v795 = vmul.f32 %v689, %v772
        %v796 = vmul.f32 %v690, %v775
        %v797 = vmul.f32 %v691, %v778
        %v798 = vmul.f32 %v692, %v781
        %v799 = vmul.f32 %v693, %v784
        %v800 = vmul.f32 %v694, %v787
        %v801 = vmul.f32 %v695, %v790
        %v802 = vmul.f32 %v696, %v793
        %vm803 = vcmask 523264
        %v805 = vsel %vm803, %v529, 0
        %v808 = vsel %vm803, %v530, 0
        %v811 = vsel %vm803, %v531, 0
        %v814 = vsel %vm803, %v532, 0
        %v817 = vsel %vm803, %v533, 0
        %v820 = vsel %vm803, %v534, 0
        %v823 = vsel %vm803, %v535, 0
        %v826 = vsel %vm803, %v536, 0
        %828 = vmatpush.msra.mxu0 0.0
        %829 = vmatpush.msra.mxu0 0.0
        %830 = vmatpush.msra.mxu0 0.0
        %831 = vmatpush.msra.mxu0 0.0
        %832 = vmatpush.msra.mxu0 0.0
        %833 = vmatpush.msra.mxu0 0.0
        %834 = vmatpush.msra.mxu0 0.0
        %835 = vmatpush.msra.mxu0 0.0
        %836 = vmatpush.msra.mxu0 %v802
        %837 = vmatpush.msra.mxu0 %v801
        %838 = vmatpush.msra.mxu0 %v800
        %839 = vmatpush.msra.mxu0 %v799
        %840 = vmatpush.msra.mxu0 %v798
        %841 = vmatpush.msra.mxu0 %v797
        %842 = vmatpush.msra.mxu0 %v796
        %843 = vmatpush.msra.mxu0 %v795
        %844 = vmatmul.f32.gmra.mxu0 %v805
        %v845 = vpop.f32.mrf.mxu0
        %v846 = vadd.f32 0.0, %v845
        %847 = vmatmul.f32.gmra.mxu0 %v808
        %v848 = vpop.f32.mrf.mxu0
        %v849 = vadd.f32 0.0, %v848
        %850 = vmatmul.f32.gmra.mxu0 %v811
        %v851 = vpop.f32.mrf.mxu0
        %v852 = vadd.f32 0.0, %v851
        %853 = vmatmul.f32.gmra.mxu0 %v814
        %v854 = vpop.f32.mrf.mxu0
        %v855 = vadd.f32 0.0, %v854
        %856 = vmatmul.f32.gmra.mxu0 %v817
        %v857 = vpop.f32.mrf.mxu0
        %v858 = vadd.f32 0.0, %v857
        %859 = vmatmul.f32.gmra.mxu0 %v820
        %v860 = vpop.f32.mrf.mxu0
        %v861 = vadd.f32 0.0, %v860
        %862 = vmatmul.f32.gmra.mxu0 %v823
        %v863 = vpop.f32.mrf.mxu0
        %v864 = vadd.f32 0.0, %v863
        %865 = vmatmul.f32.gmra.mxu0 %v826
        %v866 = vpop.f32.mrf.mxu0
        %v867 = vadd.f32 0.0, %v866
        %868 = vdwg.mxu0
        %v869 = vld [vmem:[%s4] sm:$0x1]
        %v871 = vperm.slane %v869, 0
        %v873 = vsub.f32 %v846, %v871
        %v874 = vsub.f32 %v849, %v871
        %v875 = vsub.f32 %v852, %v871
        %v876 = vsub.f32 %v855, %v871
        %v877 = vsub.f32 %v858, %v871
        %v878 = vsub.f32 %v861, %v871
        %v879 = vsub.f32 %v864, %v871
        %v880 = vsub.f32 %v867, %v871
        %v881 = vld [vmem:[#allocation10] sm:$0xff]
        %v882 = vld [vmem:[#allocation10 + $0x8] sm:$0xff]
        %v883 = vld [vmem:[#allocation10 + $0x10] sm:$0xff]
        %v884 = vld [vmem:[#allocation10 + $0x18] sm:$0xff]
        %v885 = vld [vmem:[#allocation10 + $0x20] sm:$0xff]
        %v886 = vld [vmem:[#allocation10 + $0x28] sm:$0xff]
        %v887 = vld [vmem:[#allocation10 + $0x30] sm:$0xff]
        %v888 = vld [vmem:[#allocation10 + $0x38] sm:$0xff]
        %v889 = vld [vmem:[#allocation10 + $0x40] sm:$0xff]
        %v890 = vld [vmem:[#allocation10 + $0x48] sm:$0xff]
        %v891 = vld [vmem:[#allocation10 + $0x50] sm:$0xff]
        %v892 = vld [vmem:[#allocation10 + $0x58] sm:$0xff]
        %v893 = vld [vmem:[#allocation10 + $0x60] sm:$0xff]
        %v894 = vld [vmem:[#allocation10 + $0x68] sm:$0xff]
        %v895 = vld [vmem:[#allocation10 + $0x70] sm:$0xff]
        %v896 = vld [vmem:[#allocation10 + $0x78] sm:$0xff]
        %v897 = vld [vmem:[#allocation11] sm:$0xff]
        %v898 = vld [vmem:[#allocation11 + $0x8] sm:$0xff]
        %v899 = vld [vmem:[#allocation11 + $0x10] sm:$0xff]
        %v900 = vld [vmem:[#allocation11 + $0x18] sm:$0xff]
        %v901 = vld [vmem:[#allocation11 + $0x20] sm:$0xff]
        %v902 = vld [vmem:[#allocation11 + $0x28] sm:$0xff]
        %v903 = vld [vmem:[#allocation11 + $0x30] sm:$0xff]
        %v904 = vld [vmem:[#allocation11 + $0x38] sm:$0xff]
        %v905 = vld [vmem:[#allocation11 + $0x40] sm:$0xff]
        %v906 = vld [vmem:[#allocation11 + $0x48] sm:$0xff]
        %v907 = vld [vmem:[#allocation11 + $0x50] sm:$0xff]
        %v908 = vld [vmem:[#allocation11 + $0x58] sm:$0xff]
        %v909 = vld [vmem:[#allocation11 + $0x60] sm:$0xff]
        %v910 = vld [vmem:[#allocation11 + $0x68] sm:$0xff]
        %v911 = vld [vmem:[#allocation11 + $0x70] sm:$0xff]
        %v912 = vld [vmem:[#allocation11 + $0x78] sm:$0xff]
        %v913 = vmul.f32 %v873, %v873
        %v914 = vmul.f32 %v874, %v874
        %v915 = vmul.f32 %v875, %v875
        %v916 = vmul.f32 %v876, %v876
        %v917 = vmul.f32 %v877, %v877
        %v918 = vmul.f32 %v878, %v878
        %v919 = vmul.f32 %v879, %v879
        %v920 = vmul.f32 %v880, %v880
        %921 = vadd.xlane.f32.xlu0 %v913
        %v922 = vpop.xlane.xlu0 %921
        %923 = vadd.xlane.f32.xlu0 %v914
        %v924 = vpop.xlane.xlu0 %923
        %925 = vadd.xlane.f32.xlu0 %v915
        %v926 = vpop.xlane.xlu0 %925
        %927 = vadd.xlane.f32.xlu0 %v916
        %v928 = vpop.xlane.xlu0 %927
        %929 = vadd.xlane.f32.xlu0 %v917
        %v930 = vpop.xlane.xlu0 %929
        %931 = vadd.xlane.f32.xlu0 %v918
        %v932 = vpop.xlane.xlu0 %931
        %933 = vadd.xlane.f32.xlu0 %v919
        %v934 = vpop.xlane.xlu0 %933
        %935 = vadd.xlane.f32.xlu0 %v920
        %v936 = vpop.xlane.xlu0 %935
        %v937 = vadd.f32 %v922, 1e-12
        %v938 = vadd.f32 %v924, 1e-12
        %v939 = vadd.f32 %v926, 1e-12
        %v940 = vadd.f32 %v928, 1e-12
        %v941 = vadd.f32 %v930, 1e-12
        %v942 = vadd.f32 %v932, 1e-12
        %v943 = vadd.f32 %v934, 1e-12
        %v944 = vadd.f32 %v936, 1e-12
        %v945 = vrsqrt.pop %v937
        %v946 = vmul.f32 %v945, %v937
        %v947 = vmul.f32 %v946, %v945
        %v948 = vmul.f32 0.5, %v947
        %v949 = vsub.f32 1.5, %v948
        %v950 = vmul.f32 %v945, %v949
        %vm951 = vweird.f32 %v937
        %vm952 = vweird.f32 %v945
        %vm953 = vmor %vm951, %vm952
        %v954 = vsel %vm953, %v945, %v950
        %v955 = vrsqrt.pop %v938
        %v956 = vmul.f32 %v955, %v938
        %v957 = vmul.f32 %v956, %v955
        %v958 = vmul.f32 0.5, %v957
        %v959 = vsub.f32 1.5, %v958
        %v960 = vmul.f32 %v955, %v959
        %vm961 = vweird.f32 %v938
        %vm962 = vweird.f32 %v955
        %vm963 = vmor %vm961, %vm962
        %v964 = vsel %vm963, %v955, %v960
        %v965 = vrsqrt.pop %v939
        %v966 = vmul.f32 %v965, %v939
        %v967 = vmul.f32 %v966, %v965
        %v968 = vmul.f32 0.5, %v967
        %v969 = vsub.f32 1.5, %v968
        %v970 = vmul.f32 %v965, %v969
        %vm971 = vweird.f32 %v939
        %vm972 = vweird.f32 %v965
        %vm973 = vmor %vm971, %vm972
        %v974 = vsel %vm973, %v965, %v970
        %v975 = vrsqrt.pop %v940
        %v976 = vmul.f32 %v975, %v940
        %v977 = vmul.f32 %v976, %v975
        %v978 = vmul.f32 0.5, %v977
        %v979 = vsub.f32 1.5, %v978
        %v980 = vmul.f32 %v975, %v979
        %vm981 = vweird.f32 %v940
        %vm982 = vweird.f32 %v975
        %vm983 = vmor %vm981, %vm982
        %v984 = vsel %vm983, %v975, %v980
        %v985 = vrsqrt.pop %v941
        %v986 = vmul.f32 %v985, %v941
        %v987 = vmul.f32 %v986, %v985
        %v988 = vmul.f32 0.5, %v987
        %v989 = vsub.f32 1.5, %v988
        %v990 = vmul.f32 %v985, %v989
        %vm991 = vweird.f32 %v941
        %vm992 = vweird.f32 %v985
        %vm993 = vmor %vm991, %vm992
        %v994 = vsel %vm993, %v985, %v990
        %v995 = vrsqrt.pop %v942
        %v996 = vmul.f32 %v995, %v942
        %v997 = vmul.f32 %v996, %v995
        %v998 = vmul.f32 0.5, %v997
        %v999 = vsub.f32 1.5, %v998
        %v1000 = vmul.f32 %v995, %v999
        %vm1001 = vweird.f32 %v942
        %vm1002 = vweird.f32 %v995
        %vm1003 = vmor %vm1001, %vm1002
        %v1004 = vsel %vm1003, %v995, %v1000
        %v1005 = vrsqrt.pop %v943
        %v1006 = vmul.f32 %v1005, %v943
        %v1007 = vmul.f32 %v1006, %v1005
        %v1008 = vmul.f32 0.5, %v1007
        %v1009 = vsub.f32 1.5, %v1008
        %v1010 = vmul.f32 %v1005, %v1009
        %vm1011 = vweird.f32 %v943
        %vm1012 = vweird.f32 %v1005
        %vm1013 = vmor %vm1011, %vm1012
        %v1014 = vsel %vm1013, %v1005, %v1010
        %v1015 = vrsqrt.pop %v944
        %v1016 = vmul.f32 %v1015, %v944
        %v1017 = vmul.f32 %v1016, %v1015
        %v1018 = vmul.f32 0.5, %v1017
        %v1019 = vsub.f32 1.5, %v1018
        %v1020 = vmul.f32 %v1015, %v1019
        %vm1021 = vweird.f32 %v944
        %vm1022 = vweird.f32 %v1015
        %vm1023 = vmor %vm1021, %vm1022
        %v1024 = vsel %vm1023, %v1015, %v1020
        %v1025 = vmul.f32 %v873, %v954
        %v1026 = vmul.f32 %v874, %v964
        %v1027 = vmul.f32 %v875, %v974
        %v1028 = vmul.f32 %v876, %v984
        %v1029 = vmul.f32 %v877, %v994
        %v1030 = vmul.f32 %v878, %v1004
        %v1031 = vmul.f32 %v879, %v1014
        %v1032 = vmul.f32 %v880, %v1024
        %v1033 = vmul.f32 %v922, %v954
        %v1034 = vmul.f32 %v924, %v964
        %v1035 = vmul.f32 %v926, %v974
        %v1036 = vmul.f32 %v928, %v984
        %v1037 = vmul.f32 %v930, %v994
        %v1038 = vmul.f32 %v932, %v1004
        %v1039 = vmul.f32 %v934, %v1014
        %v1040 = vmul.f32 %v936, %v1024
        %1041 = vmatpush.msra.mxu0 %v896
        %1042 = vmatpush.msra.mxu0 %v895
        %1043 = vmatpush.msra.mxu0 %v894
        %1044 = vmatpush.msra.mxu0 %v893
        %1045 = vmatpush.msra.mxu0 %v892
        %1046 = vmatpush.msra.mxu0 %v891
        %1047 = vmatpush.msra.mxu0 %v890
        %1048 = vmatpush.msra.mxu0 %v889
        %1049 = vmatpush.msra.mxu0 %v888
        %1050 = vmatpush.msra.mxu0 %v887
        %1051 = vmatpush.msra.mxu0 %v886
        %1052 = vmatpush.msra.mxu0 %v885
        %1053 = vmatpush.msra.mxu0 %v884
        %1054 = vmatpush.msra.mxu0 %v883
        %1055 = vmatpush.msra.mxu0 %v882
        %1056 = vmatpush.msra.mxu0 %v881
        %1057 = vmatmul.f32.gmra.mxu0 %v1025
        %v1058 = vpop.f32.mrf.mxu0
        %v1059 = vadd.f32 0.0, %v1058
        %1060 = vmatmul.f32.gmra.mxu0 %v1026
        %v1061 = vpop.f32.mrf.mxu0
        %v1062 = vadd.f32 0.0, %v1061
        %1063 = vmatmul.f32.gmra.mxu0 %v1027
        %v1064 = vpop.f32.mrf.mxu0
        %v1065 = vadd.f32 0.0, %v1064
        %1066 = vmatmul.f32.gmra.mxu0 %v1028
        %v1067 = vpop.f32.mrf.mxu0
        %v1068 = vadd.f32 0.0, %v1067
        %1069 = vmatmul.f32.gmra.mxu0 %v1029
        %v1070 = vpop.f32.mrf.mxu0
        %v1071 = vadd.f32 0.0, %v1070
        %1072 = vmatmul.f32.gmra.mxu0 %v1030
        %v1073 = vpop.f32.mrf.mxu0
        %v1074 = vadd.f32 0.0, %v1073
        %1075 = vmatmul.f32.gmra.mxu0 %v1031
        %v1076 = vpop.f32.mrf.mxu0
        %v1077 = vadd.f32 0.0, %v1076
        %1078 = vmatmul.f32.gmra.mxu0 %v1032
        %v1079 = vpop.f32.mrf.mxu0
        %v1080 = vadd.f32 0.0, %v1079
        %1081 = vdwg.mxu0
        %v1082 = vmul.f32 %v1059, 1.442695
        %v1083 = vpow.pop %v1082
        %v1084 = vmul.f32 %v1062, 1.442695
        %v1085 = vpow.pop %v1084
        %v1086 = vmul.f32 %v1065, 1.442695
        %v1087 = vpow.pop %v1086
        %v1088 = vmul.f32 %v1068, 1.442695
        %v1089 = vpow.pop %v1088
        %v1090 = vmul.f32 %v1071, 1.442695
        %v1091 = vpow.pop %v1090
        %v1092 = vmul.f32 %v1074, 1.442695
        %v1093 = vpow.pop %v1092
        %v1094 = vmul.f32 %v1077, 1.442695
        %v1095 = vpow.pop %v1094
        %v1096 = vmul.f32 %v1080, 1.442695
        %v1097 = vpow.pop %v1096
        %1098 = vmatpush.msra.mxu0 %v912
        %1099 = vmatpush.msra.mxu0 %v911
        %1100 = vmatpush.msra.mxu0 %v910
        %1101 = vmatpush.msra.mxu0 %v909
        %1102 = vmatpush.msra.mxu0 %v908
        %1103 = vmatpush.msra.mxu0 %v907
        %1104 = vmatpush.msra.mxu0 %v906
        %1105 = vmatpush.msra.mxu0 %v905
        %1106 = vmatpush.msra.mxu0 %v904
        %1107 = vmatpush.msra.mxu0 %v903
        %1108 = vmatpush.msra.mxu0 %v902
        %1109 = vmatpush.msra.mxu0 %v901
        %1110 = vmatpush.msra.mxu0 %v900
        %1111 = vmatpush.msra.mxu0 %v899
        %1112 = vmatpush.msra.mxu0 %v898
        %1113 = vmatpush.msra.mxu0 %v897
        %1114 = vmatmul.f32.gmra.mxu0 %v1083
        %v1115 = vpop.f32.mrf.mxu0
        %v1116 = vadd.f32 0.0, %v1115
        %1117 = vmatmul.f32.gmra.mxu0 %v1085
        %v1118 = vpop.f32.mrf.mxu0
        %v1119 = vadd.f32 0.0, %v1118
        %1120 = vmatmul.f32.gmra.mxu0 %v1087
        %v1121 = vpop.f32.mrf.mxu0
        %v1122 = vadd.f32 0.0, %v1121
        %1123 = vmatmul.f32.gmra.mxu0 %v1089
        %v1124 = vpop.f32.mrf.mxu0
        %v1125 = vadd.f32 0.0, %v1124
        %1126 = vmatmul.f32.gmra.mxu0 %v1091
        %v1127 = vpop.f32.mrf.mxu0
        %v1128 = vadd.f32 0.0, %v1127
        %1129 = vmatmul.f32.gmra.mxu0 %v1093
        %v1130 = vpop.f32.mrf.mxu0
        %v1131 = vadd.f32 0.0, %v1130
        %1132 = vmatmul.f32.gmra.mxu0 %v1095
        %v1133 = vpop.f32.mrf.mxu0
        %v1134 = vadd.f32 0.0, %v1133
        %1135 = vmatmul.f32.gmra.mxu0 %v1097
        %v1136 = vpop.f32.mrf.mxu0
        %v1137 = vadd.f32 0.0, %v1136
        %1138 = vdwg.mxu0
        %v1139 = vmul.f32 %v1033, %v1116
        %v1140 = vmul.f32 %v1034, %v1119
        %v1141 = vmul.f32 %v1035, %v1122
        %v1142 = vmul.f32 %v1036, %v1125
        %v1143 = vmul.f32 %v1037, %v1128
        %v1144 = vmul.f32 %v1038, %v1131
        %v1145 = vmul.f32 %v1039, %v1134
        %v1146 = vmul.f32 %v1040, %v1137
        %v1147 = vadd.f32 %v1139, %v795
        %v1148 = vadd.f32 %v1140, %v796
        %v1149 = vadd.f32 %v1141, %v797
        %v1150 = vadd.f32 %v1142, %v798
        %v1151 = vadd.f32 %v1143, %v799
        %v1152 = vadd.f32 %v1144, %v800
        %v1153 = vadd.f32 %v1145, %v801
        %v1154 = vadd.f32 %v1146, %v802
        %1155 = vmatpush.msra.mxu0 0.0
        %1156 = vmatpush.msra.mxu0 0.0
        %1157 = vmatpush.msra.mxu0 0.0
        %1158 = vmatpush.msra.mxu0 0.0
        %1159 = vmatpush.msra.mxu0 0.0
        %1160 = vmatpush.msra.mxu0 0.0
        %1161 = vmatpush.msra.mxu0 0.0
        %1162 = vmatpush.msra.mxu0 0.0
        %1163 = vmatpush.msra.mxu0 %v1154
        %1164 = vmatpush.msra.mxu0 %v1153
        %1165 = vmatpush.msra.mxu0 %v1152
        %1166 = vmatpush.msra.mxu0 %v1151
        %1167 = vmatpush.msra.mxu0 %v1150
        %1168 = vmatpush.msra.mxu0 %v1149
        %1169 = vmatpush.msra.mxu0 %v1148
        %1170 = vmatpush.msra.mxu0 %v1147
        %1171 = vmatmul.f32.gmra.mxu0 %v805
        %v1172 = vpop.f32.mrf.mxu0
        %v1173 = vadd.f32 0.0, %v1172
        %1174 = vmatmul.f32.gmra.mxu0 %v808
        %v1175 = vpop.f32.mrf.mxu0
        %v1176 = vadd.f32 0.0, %v1175
        %1177 = vmatmul.f32.gmra.mxu0 %v811
        %v1178 = vpop.f32.mrf.mxu0
        %v1179 = vadd.f32 0.0, %v1178
        %1180 = vmatmul.f32.gmra.mxu0 %v814
        %v1181 = vpop.f32.mrf.mxu0
        %v1182 = vadd.f32 0.0, %v1181
        %1183 = vmatmul.f32.gmra.mxu0 %v817
        %v1184 = vpop.f32.mrf.mxu0
        %v1185 = vadd.f32 0.0, %v1184
        %1186 = vmatmul.f32.gmra.mxu0 %v820
        %v1187 = vpop.f32.mrf.mxu0
        %v1188 = vadd.f32 0.0, %v1187
        %1189 = vmatmul.f32.gmra.mxu0 %v823
        %v1190 = vpop.f32.mrf.mxu0
        %v1191 = vadd.f32 0.0, %v1190
        %1192 = vmatmul.f32.gmra.mxu0 %v826
        %v1193 = vpop.f32.mrf.mxu0
        %v1194 = vadd.f32 0.0, %v1193
        %1195 = vdwg.mxu0
        %v1196 = vld [vmem:[%s7] sm:$0x1]
        %v1198 = vperm.slane %v1196, 0
        %v1200 = vsub.f32 %v1173, %v1198
        %v1201 = vsub.f32 %v1176, %v1198
        %v1202 = vsub.f32 %v1179, %v1198
        %v1203 = vsub.f32 %v1182, %v1198
        %v1204 = vsub.f32 %v1185, %v1198
        %v1205 = vsub.f32 %v1188, %v1198
        %v1206 = vsub.f32 %v1191, %v1198
        %v1207 = vsub.f32 %v1194, %v1198
        %v1208 = vld [vmem:[#allocation13] sm:$0xff]
        %v1209 = vld [vmem:[#allocation13 + $0x8] sm:$0xff]
        %v1210 = vld [vmem:[#allocation13 + $0x10] sm:$0xff]
        %v1211 = vld [vmem:[#allocation13 + $0x18] sm:$0xff]
        %v1212 = vld [vmem:[#allocation13 + $0x20] sm:$0xff]
        %v1213 = vld [vmem:[#allocation13 + $0x28] sm:$0xff]
        %v1214 = vld [vmem:[#allocation13 + $0x30] sm:$0xff]
        %v1215 = vld [vmem:[#allocation13 + $0x38] sm:$0xff]
        %v1216 = vld [vmem:[#allocation13 + $0x40] sm:$0xff]
        %v1217 = vld [vmem:[#allocation13 + $0x48] sm:$0xff]
        %v1218 = vld [vmem:[#allocation13 + $0x50] sm:$0xff]
        %v1219 = vld [vmem:[#allocation13 + $0x58] sm:$0xff]
        %v1220 = vld [vmem:[#allocation13 + $0x60] sm:$0xff]
        %v1221 = vld [vmem:[#allocation13 + $0x68] sm:$0xff]
        %v1222 = vld [vmem:[#allocation13 + $0x70] sm:$0xff]
        %v1223 = vld [vmem:[#allocation13 + $0x78] sm:$0xff]
        %v1224 = vld [vmem:[#allocation14] sm:$0xff]
        %v1225 = vld [vmem:[#allocation14 + $0x8] sm:$0xff]
        %v1226 = vld [vmem:[#allocation14 + $0x10] sm:$0xff]
        %v1227 = vld [vmem:[#allocation14 + $0x18] sm:$0xff]
        %v1228 = vld [vmem:[#allocation14 + $0x20] sm:$0xff]
        %v1229 = vld [vmem:[#allocation14 + $0x28] sm:$0xff]
        %v1230 = vld [vmem:[#allocation14 + $0x30] sm:$0xff]
        %v1231 = vld [vmem:[#allocation14 + $0x38] sm:$0xff]
        %v1232 = vld [vmem:[#allocation14 + $0x40] sm:$0xff]
        %v1233 = vld [vmem:[#allocation14 + $0x48] sm:$0xff]
        %v1234 = vld [vmem:[#allocation14 + $0x50] sm:$0xff]
        %v1235 = vld [vmem:[#allocation14 + $0x58] sm:$0xff]
        %v1236 = vld [vmem:[#allocation14 + $0x60] sm:$0xff]
        %v1237 = vld [vmem:[#allocation14 + $0x68] sm:$0xff]
        %v1238 = vld [vmem:[#allocation14 + $0x70] sm:$0xff]
        %v1239 = vld [vmem:[#allocation14 + $0x78] sm:$0xff]
        %v1240 = vmul.f32 %v1200, %v1200
        %v1241 = vmul.f32 %v1201, %v1201
        %v1242 = vmul.f32 %v1202, %v1202
        %v1243 = vmul.f32 %v1203, %v1203
        %v1244 = vmul.f32 %v1204, %v1204
        %v1245 = vmul.f32 %v1205, %v1205
        %v1246 = vmul.f32 %v1206, %v1206
        %v1247 = vmul.f32 %v1207, %v1207
        %1248 = vadd.xlane.f32.xlu0 %v1240
        %v1249 = vpop.xlane.xlu0 %1248
        %1250 = vadd.xlane.f32.xlu0 %v1241
        %v1251 = vpop.xlane.xlu0 %1250
        %1252 = vadd.xlane.f32.xlu0 %v1242
        %v1253 = vpop.xlane.xlu0 %1252
        %1254 = vadd.xlane.f32.xlu0 %v1243
        %v1255 = vpop.xlane.xlu0 %1254
        %1256 = vadd.xlane.f32.xlu0 %v1244
        %v1257 = vpop.xlane.xlu0 %1256
        %1258 = vadd.xlane.f32.xlu0 %v1245
        %v1259 = vpop.xlane.xlu0 %1258
        %1260 = vadd.xlane.f32.xlu0 %v1246
        %v1261 = vpop.xlane.xlu0 %1260
        %1262 = vadd.xlane.f32.xlu0 %v1247
        %v1263 = vpop.xlane.xlu0 %1262
        %v1264 = vadd.f32 %v1249, 1e-12
        %v1265 = vadd.f32 %v1251, 1e-12
        %v1266 = vadd.f32 %v1253, 1e-12
        %v1267 = vadd.f32 %v1255, 1e-12
        %v1268 = vadd.f32 %v1257, 1e-12
        %v1269 = vadd.f32 %v1259, 1e-12
        %v1270 = vadd.f32 %v1261, 1e-12
        %v1271 = vadd.f32 %v1263, 1e-12
        %v1272 = vrsqrt.pop %v1264
        %v1273 = vmul.f32 %v1272, %v1264
        %v1274 = vmul.f32 %v1273, %v1272
        %v1275 = vmul.f32 0.5, %v1274
        %v1276 = vsub.f32 1.5, %v1275
        %v1277 = vmul.f32 %v1272, %v1276
        %vm1278 = vweird.f32 %v1264
        %vm1279 = vweird.f32 %v1272
        %vm1280 = vmor %vm1278, %vm1279
        %v1281 = vsel %vm1280, %v1272, %v1277
        %v1282 = vrsqrt.pop %v1265
        %v1283 = vmul.f32 %v1282, %v1265
        %v1284 = vmul.f32 %v1283, %v1282
        %v1285 = vmul.f32 0.5, %v1284
        %v1286 = vsub.f32 1.5, %v1285
        %v1287 = vmul.f32 %v1282, %v1286
        %vm1288 = vweird.f32 %v1265
        %vm1289 = vweird.f32 %v1282
        %vm1290 = vmor %vm1288, %vm1289
        %v1291 = vsel %vm1290, %v1282, %v1287
        %v1292 = vrsqrt.pop %v1266
        %v1293 = vmul.f32 %v1292, %v1266
        %v1294 = vmul.f32 %v1293, %v1292
        %v1295 = vmul.f32 0.5, %v1294
        %v1296 = vsub.f32 1.5, %v1295
        %v1297 = vmul.f32 %v1292, %v1296
        %vm1298 = vweird.f32 %v1266
        %vm1299 = vweird.f32 %v1292
        %vm1300 = vmor %vm1298, %vm1299
        %v1301 = vsel %vm1300, %v1292, %v1297
        %v1302 = vrsqrt.pop %v1267
        %v1303 = vmul.f32 %v1302, %v1267
        %v1304 = vmul.f32 %v1303, %v1302
        %v1305 = vmul.f32 0.5, %v1304
        %v1306 = vsub.f32 1.5, %v1305
        %v1307 = vmul.f32 %v1302, %v1306
        %vm1308 = vweird.f32 %v1267
        %vm1309 = vweird.f32 %v1302
        %vm1310 = vmor %vm1308, %vm1309
        %v1311 = vsel %vm1310, %v1302, %v1307
        %v1312 = vrsqrt.pop %v1268
        %v1313 = vmul.f32 %v1312, %v1268
        %v1314 = vmul.f32 %v1313, %v1312
        %v1315 = vmul.f32 0.5, %v1314
        %v1316 = vsub.f32 1.5, %v1315
        %v1317 = vmul.f32 %v1312, %v1316
        %vm1318 = vweird.f32 %v1268
        %vm1319 = vweird.f32 %v1312
        %vm1320 = vmor %vm1318, %vm1319
        %v1321 = vsel %vm1320, %v1312, %v1317
        %v1322 = vrsqrt.pop %v1269
        %v1323 = vmul.f32 %v1322, %v1269
        %v1324 = vmul.f32 %v1323, %v1322
        %v1325 = vmul.f32 0.5, %v1324
        %v1326 = vsub.f32 1.5, %v1325
        %v1327 = vmul.f32 %v1322, %v1326
        %vm1328 = vweird.f32 %v1269
        %vm1329 = vweird.f32 %v1322
        %vm1330 = vmor %vm1328, %vm1329
        %v1331 = vsel %vm1330, %v1322, %v1327
        %v1332 = vrsqrt.pop %v1270
        %v1333 = vmul.f32 %v1332, %v1270
        %v1334 = vmul.f32 %v1333, %v1332
        %v1335 = vmul.f32 0.5, %v1334
        %v1336 = vsub.f32 1.5, %v1335
        %v1337 = vmul.f32 %v1332, %v1336
        %vm1338 = vweird.f32 %v1270
        %vm1339 = vweird.f32 %v1332
        %vm1340 = vmor %vm1338, %vm1339
        %v1341 = vsel %vm1340, %v1332, %v1337
        %v1342 = vrsqrt.pop %v1271
        %v1343 = vmul.f32 %v1342, %v1271
        %v1344 = vmul.f32 %v1343, %v1342
        %v1345 = vmul.f32 0.5, %v1344
        %v1346 = vsub.f32 1.5, %v1345
        %v1347 = vmul.f32 %v1342, %v1346
        %vm1348 = vweird.f32 %v1271
        %vm1349 = vweird.f32 %v1342
        %vm1350 = vmor %vm1348, %vm1349
        %v1351 = vsel %vm1350, %v1342, %v1347
        %v1352 = vmul.f32 %v1200, %v1281
        %v1353 = vmul.f32 %v1201, %v1291
        %v1354 = vmul.f32 %v1202, %v1301
        %v1355 = vmul.f32 %v1203, %v1311
        %v1356 = vmul.f32 %v1204, %v1321
        %v1357 = vmul.f32 %v1205, %v1331
        %v1358 = vmul.f32 %v1206, %v1341
        %v1359 = vmul.f32 %v1207, %v1351
        %v1360 = vmul.f32 %v1249, %v1281
        %v1361 = vmul.f32 %v1251, %v1291
        %v1362 = vmul.f32 %v1253, %v1301
        %v1363 = vmul.f32 %v1255, %v1311
        %v1364 = vmul.f32 %v1257, %v1321
        %v1365 = vmul.f32 %v1259, %v1331
        %v1366 = vmul.f32 %v1261, %v1341
        %v1367 = vmul.f32 %v1263, %v1351
        %1368 = vmatpush.msra.mxu0 %v1223
        %1369 = vmatpush.msra.mxu0 %v1222
        %1370 = vmatpush.msra.mxu0 %v1221
        %1371 = vmatpush.msra.mxu0 %v1220
        %1372 = vmatpush.msra.mxu0 %v1219
        %1373 = vmatpush.msra.mxu0 %v1218
        %1374 = vmatpush.msra.mxu0 %v1217
        %1375 = vmatpush.msra.mxu0 %v1216
        %1376 = vmatpush.msra.mxu0 %v1215
        %1377 = vmatpush.msra.mxu0 %v1214
        %1378 = vmatpush.msra.mxu0 %v1213
        %1379 = vmatpush.msra.mxu0 %v1212
        %1380 = vmatpush.msra.mxu0 %v1211
        %1381 = vmatpush.msra.mxu0 %v1210
        %1382 = vmatpush.msra.mxu0 %v1209
        %1383 = vmatpush.msra.mxu0 %v1208
        %1384 = vmatmul.f32.gmra.mxu0 %v1352
        %v1385 = vpop.f32.mrf.mxu0
        %v1386 = vadd.f32 0.0, %v1385
        %1387 = vmatmul.f32.gmra.mxu0 %v1353
        %v1388 = vpop.f32.mrf.mxu0
        %v1389 = vadd.f32 0.0, %v1388
        %1390 = vmatmul.f32.gmra.mxu0 %v1354
        %v1391 = vpop.f32.mrf.mxu0
        %v1392 = vadd.f32 0.0, %v1391
        %1393 = vmatmul.f32.gmra.mxu0 %v1355
        %v1394 = vpop.f32.mrf.mxu0
        %v1395 = vadd.f32 0.0, %v1394
        %1396 = vmatmul.f32.gmra.mxu0 %v1356
        %v1397 = vpop.f32.mrf.mxu0
        %v1398 = vadd.f32 0.0, %v1397
        %1399 = vmatmul.f32.gmra.mxu0 %v1357
        %v1400 = vpop.f32.mrf.mxu0
        %v1401 = vadd.f32 0.0, %v1400
        %1402 = vmatmul.f32.gmra.mxu0 %v1358
        %v1403 = vpop.f32.mrf.mxu0
        %v1404 = vadd.f32 0.0, %v1403
        %1405 = vmatmul.f32.gmra.mxu0 %v1359
        %v1406 = vpop.f32.mrf.mxu0
        %v1407 = vadd.f32 0.0, %v1406
        %1408 = vdwg.mxu0
        %v1409 = vmul.f32 %v1386, 1.442695
        %v1410 = vpow.pop %v1409
        %v1411 = vmul.f32 %v1389, 1.442695
        %v1412 = vpow.pop %v1411
        %v1413 = vmul.f32 %v1392, 1.442695
        %v1414 = vpow.pop %v1413
        %v1415 = vmul.f32 %v1395, 1.442695
        %v1416 = vpow.pop %v1415
        %v1417 = vmul.f32 %v1398, 1.442695
        %v1418 = vpow.pop %v1417
        %v1419 = vmul.f32 %v1401, 1.442695
        %v1420 = vpow.pop %v1419
        %v1421 = vmul.f32 %v1404, 1.442695
        %v1422 = vpow.pop %v1421
        %v1423 = vmul.f32 %v1407, 1.442695
        %v1424 = vpow.pop %v1423
        %1425 = vmatpush.msra.mxu0 %v1239
        %1426 = vmatpush.msra.mxu0 %v1238
        %1427 = vmatpush.msra.mxu0 %v1237
        %1428 = vmatpush.msra.mxu0 %v1236
        %1429 = vmatpush.msra.mxu0 %v1235
        %1430 = vmatpush.msra.mxu0 %v1234
        %1431 = vmatpush.msra.mxu0 %v1233
        %1432 = vmatpush.msra.mxu0 %v1232
        %1433 = vmatpush.msra.mxu0 %v1231
        %1434 = vmatpush.msra.mxu0 %v1230
        %1435 = vmatpush.msra.mxu0 %v1229
        %1436 = vmatpush.msra.mxu0 %v1228
        %1437 = vmatpush.msra.mxu0 %v1227
        %1438 = vmatpush.msra.mxu0 %v1226
        %1439 = vmatpush.msra.mxu0 %v1225
        %1440 = vmatpush.msra.mxu0 %v1224
        %1441 = vmatmul.f32.gmra.mxu0 %v1410
        %v1442 = vpop.f32.mrf.mxu0
        %v1443 = vadd.f32 0.0, %v1442
        %1444 = vmatmul.f32.gmra.mxu0 %v1412
        %v1445 = vpop.f32.mrf.mxu0
        %v1446 = vadd.f32 0.0, %v1445
        %1447 = vmatmul.f32.gmra.mxu0 %v1414
        %v1448 = vpop.f32.mrf.mxu0
        %v1449 = vadd.f32 0.0, %v1448
        %1450 = vmatmul.f32.gmra.mxu0 %v1416
        %v1451 = vpop.f32.mrf.mxu0
        %v1452 = vadd.f32 0.0, %v1451
        %1453 = vmatmul.f32.gmra.mxu0 %v1418
        %v1454 = vpop.f32.mrf.mxu0
        %v1455 = vadd.f32 0.0, %v1454
        %1456 = vmatmul.f32.gmra.mxu0 %v1420
        %v1457 = vpop.f32.mrf.mxu0
        %v1458 = vadd.f32 0.0, %v1457
        %1459 = vmatmul.f32.gmra.mxu0 %v1422
        %v1460 = vpop.f32.mrf.mxu0
        %v1461 = vadd.f32 0.0, %v1460
        %1462 = vmatmul.f32.gmra.mxu0 %v1424
        %v1463 = vpop.f32.mrf.mxu0
        %v1464 = vadd.f32 0.0, %v1463
        %1465 = vdwg.mxu0
        %v1466 = vmul.f32 %v1360, %v1443
        %v1467 = vmul.f32 %v1361, %v1446
        %v1468 = vmul.f32 %v1362, %v1449
        %v1469 = vmul.f32 %v1363, %v1452
        %v1470 = vmul.f32 %v1364, %v1455
        %v1471 = vmul.f32 %v1365, %v1458
        %v1472 = vmul.f32 %v1366, %v1461
        %v1473 = vmul.f32 %v1367, %v1464
        %v1474 = vadd.f32 %v1466, %v1147
        %v1475 = vadd.f32 %v1467, %v1148
        %v1476 = vadd.f32 %v1468, %v1149
        %v1477 = vadd.f32 %v1469, %v1150
        %v1478 = vadd.f32 %v1470, %v1151
        %v1479 = vadd.f32 %v1471, %v1152
        %v1480 = vadd.f32 %v1472, %v1153
        %v1481 = vadd.f32 %v1473, %v1154
        %1482 = vst [vmem:[%s520] sm:$0xff] %v1474
        %1483 = vst [vmem:[%s520 + $0x8] sm:$0xff] %v1475
        %1484 = vst [vmem:[%s520 + $0x10] sm:$0xff] %v1476
        %1485 = vst [vmem:[%s520 + $0x18] sm:$0xff] %v1477
        %1486 = vst [vmem:[%s520 + $0x20] sm:$0xff] %v1478
        %1487 = vst [vmem:[%s520 + $0x28] sm:$0xff] %v1479
        %1488 = vst [vmem:[%s520 + $0x30] sm:$0xff] %v1480
        %1489 = vst [vmem:[%s520 + $0x38] sm:$0xff] %v1481
        %s1490 = sand.u32 %s261, 1
        %s1491 = scalar_lea.sflag [#allocation4], %s1490
        %s1492 = sand.u32 %s261, 1
        %s1493 = smul.addr %s1492, 64
        %s1494 = scalar_lea.vmem [#allocation16], %s1493
        // Predicated region
        $region93: #{tpu_custom_call.1} parent=59 // pred_check
          %p1495 = pneg %p271
        $region94: #{tpu_custom_call.1} parent=59 // pred_check_branch
          %1497 = sbr.rel (%p1495) target = $region96
        $region95: #{tpu_custom_call.1} parent=59 // pred_region
          %1499 = vsyncadd %s1491, 0
          %s1500 = smul.addr %s33, 8
          %s1501 = smul.addr %s1500, 8
          %s1502 = scalar_lea.hbm %s10, %s1501
          %s1503 = sshll.u32 %s1494, 4
          %s1504 = int_to_ptr.vmem [resolvable:$true] %s1503
          %s1505 = sshll.u32 %s1502, 4
          %s1506 = int_to_ptr.hbm [resolvable:$true] %s1505
          %1511 = dma.vmem_to_hbm [thread:$0]  %s1504, 1024, %s1506, %s1491, 128, 128, 8
        $region96: #{tpu_custom_call.1} parent=59 // pred_fallthru
          _
      $region60: #{tpu_custom_call.1} parent=5 // pred_fallthru
        _
      %p1512 = scmp.le.s32.totalorder 2, %s28
      // Predicated region
      $region97: #{tpu_custom_call.1} parent=5 // pred_check
        %p1513 = pneg %p1512
      $region98: #{tpu_custom_call.1} parent=5 // pred_check_branch
        %1515 = sbr.rel (%p1513) target = $region100
      $region99: #{tpu_custom_call.1} parent=5 // pred_region
        %s1516 = ssub.s32 %s28, 2
        // Predicated region
        $region101: #{tpu_custom_call.1} parent=99 // pred_check
          %p1517 = pneg %p277
        $region102: #{tpu_custom_call.1} parent=99 // pred_check_branch
          %1519 = sbr.rel (%p1517) target = $region104
        $region103: #{tpu_custom_call.1} parent=99 // pred_region
          %s1520 = sand.u32 %s262, 1
          %s1521 = scalar_lea.sflag [#allocation4], %s1520
          %s1522 = sand.u32 %s262, 1
          %s1523 = smul.addr %s1522, 64
          %s1524 = scalar_lea.vmem [#allocation16], %s1523
          %1526 = dma.done %s1521, 1024
        $region104: #{tpu_custom_call.1} parent=99 // pred_fallthru
          _
      $region100: #{tpu_custom_call.1} parent=5 // pred_fallthru
        _
    $region6: #{tpu_custom_call.1} parent=1 // loop_footer
      %s32 = sadd.s32 1, %s28
    $region7: #{tpu_custom_call.1} parent=1 // loop_footer_branch
      %27 = sbr.rel target = $region3
    $region8: #{tpu_custom_call.1} parent=1 // loop_exit
      _
    %1527 = vsyncpa [#allocation3], 1
    %s1528 = scalar_lea.sflag [#allocation3], 1
    %1529 = vsyncpa %s1528, 1
    %1530 = vsyncpa [#allocation6], 1
    %s1531 = scalar_lea.sflag [#allocation6], 1
    %1532 = vsyncpa %s1531, 1
    %1533 = vsyncpa [#allocation9], 1
    %1534 = vsyncpa [#allocation12], 1
    %1535 = vsyncpa [#allocation15], 1
    %1536 = vsyncpa [#allocation4], 1
    %s1537 = scalar_lea.sflag [#allocation4], 1
    %1538 = vsyncpa %s1537, 1

</llo_original>
